<compile_context>
chip_gen: v5e
topology: v5e:2x2
jax: 0.10.0
libtpu: 0.0.40
codegen_flags: <defaults>
</compile_context>

<pallas_src>
import functools

import jax
import jax.numpy as jnp
import numpy as np
from jax import lax
from jax.experimental import pallas as pl
from jax.experimental.pallas import tpu as pltpu


def _round_up(x, m):
    return ((x + m - 1) // m) * m


def _conv2d_kernel(x_ref, w_ref, b_ref, o_ref, *, KH, KW, sh, sw, dh, dw,
                   Ho, Wo, groups, cin_g, cout_g):
    """One (image, Cout-tile) per grid step.

    x_ref: (1, Hp, Wp, Cin)        padded NHWC input (native dtype)
    w_ref: (KH*KW, Cin_g, TCo)     flat, lane-dense weight tile (native dtype)
    b_ref: (1, TCo)                bias tile, float32 (zeros if bias disabled)
    o_ref: (1, Ho*Wo, TCo)         lane-dense output slab
    """
    tco = o_ref.shape[-1]
    bias_f32 = b_ref[...].astype(jnp.float32)          # (1, TCo)

    def tap_patch(kh, kw, c0, csz):
        # Slice this tap's patch directly off the ref (no whole-image materialization).
        h_sl = pl.ds(kh * dh, Ho, stride=sh) if sh > 1 else pl.ds(kh * dh, Ho)
        w_sl = pl.ds(kw * dw, Wo, stride=sw) if sw > 1 else pl.ds(kw * dw, Wo)
        p = x_ref[0, h_sl, w_sl, pl.ds(c0, csz)]        # (Ho, Wo, csz), native dtype
        return p.reshape(Ho * Wo, csz)

    if groups == 1:
        acc = jnp.zeros((Ho * Wo, tco), dtype=jnp.float32)
        for kh in range(KH):
            for kw in range(KW):
                patch = tap_patch(kh, kw, 0, cin_g)                      # (HoWo, Cin_g)
                wk = w_ref[kh * KW + kw]                                 # (Cin_g, TCo)
                acc = acc + jnp.dot(patch, wk,
                                    preferred_element_type=jnp.float32)
        o_ref[0] = (acc + bias_f32).astype(o_ref.dtype)                  # lane-dense store
    else:
        # groups > 1: whole Cout_p lives in this tile; write each group's accumulator
        # straight into its channel slice (no lane-axis concatenate).
        for g in range(groups):
            acc = jnp.zeros((Ho * Wo, cout_g), dtype=jnp.float32)
            for kh in range(KH):
                for kw in range(KW):
                    patch = tap_patch(kh, kw, g * cin_g, cin_g)
                    wk = w_ref[kh * KW + kw, :, g * cout_g:(g + 1) * cout_g]
                    acc = acc + jnp.dot(patch, wk,
                                        preferred_element_type=jnp.float32)
            acc = acc + bias_f32[:, g * cout_g:(g + 1) * cout_g]
            o_ref[0, :, g * cout_g:(g + 1) * cout_g] = acc.astype(o_ref.dtype)


def l0_conv2d_forward(x_nchw, weights, bias, *, stride=(1, 1), padding=(0, 0),
                      dilation=(1, 1), groups=1):
    """Forward pass equivalent to F.conv2d(x, weights, bias, stride, padding, dilation, groups).

    x_nchw:  (N, Cin, H, W)
    weights: (Cout, Cin // groups, KH, KW)   (PyTorch layout)
    bias:    (Cout,) or None
    returns: (N, Cout, Ho, Wo)
    """
    N, Cin, H, W = x_nchw.shape
    Cout, Cin_g, KH, KW = weights.shape
    assert Cin % groups == 0 and Cout % groups == 0
    sh, sw = stride
    ph, pw = padding
    dh, dw = dilation
    Ho = (H + 2 * ph - dh * (KH - 1) - 1) // sh + 1
    Wo = (W + 2 * pw - dw * (KW - 1) - 1) // sw + 1
    cout_g = Cout // groups

    # NCHW -> NHWC and spatial zero-padding (cheap glue in the wrapper).
    x = jnp.transpose(x_nchw, (0, 2, 3, 1))
    x = jnp.pad(x, ((0, 0), (ph, ph), (pw, pw), (0, 0)))
    Hp, Wp = H + 2 * ph, W + 2 * pw

    # Weight: (Cout, Cin_g, KH, KW) -> flat lane-dense (KH*KW, Cin_g, Cout_p),
    # Cout zero-padded to a multiple of 128 for lane-dense stores / MXU N-dim.
    Cout_p = _round_up(Cout, 128)
    w = jnp.transpose(weights, (2, 3, 1, 0)).reshape(KH * KW, Cin_g, Cout)
    if Cout_p != Cout:
        w = jnp.pad(w, ((0, 0), (0, 0), (0, Cout_p - Cout)))

    # Bias kept in float32: added at accumulator precision inside the kernel.
    if bias is None:
        b = jnp.zeros((1, Cout_p), dtype=jnp.float32)
    else:
        b = jnp.pad(bias.astype(jnp.float32).reshape(1, Cout),
                    ((0, 0), (0, Cout_p - Cout)))

    # Output-channel tiling (second "parallel" grid axis; keeps both v7x cores busy
    # even for tiny batch). groups>1 keeps a single Cout tile so group slices are local.
    if groups == 1:
        TCo = 256 if Cout_p % 256 == 0 else 128
    else:
        TCo = Cout_p
    n_co = Cout_p // TCo

    kernel = functools.partial(
        _conv2d_kernel, KH=KH, KW=KW, sh=sh, sw=sw, dh=dh, dw=dw,
        Ho=Ho, Wo=Wo, groups=groups, cin_g=Cin_g, cout_g=cout_g)

    # Explicit VMEM budget: double-buffered per-step blocks plus headroom,
    # clamped to stay within v7x's 64 MiB physical VMEM.
    itemsize = x.dtype.itemsize
    per_step = (Hp * Wp * Cin * itemsize            # input block
                + KH * KW * Cin_g * TCo * itemsize  # weight tile
                + TCo * 4                           # bias tile
                + Ho * Wo * TCo * itemsize)         # output block
    vmem_limit = int(min(60 * 2**20, max(16 * 2**20, 4 * per_step)))

    out = pl.pallas_call(
        kernel,
        out_shape=jax.ShapeDtypeStruct((N, Ho * Wo, Cout_p), x.dtype),
        grid=(N, n_co),
        in_specs=[
            pl.BlockSpec((1, Hp, Wp, Cin), lambda n, j: (n, 0, 0, 0)),
            pl.BlockSpec((KH * KW, Cin_g, TCo), lambda n, j: (0, 0, j)),
            pl.BlockSpec((1, TCo), lambda n, j: (0, j)),
        ],
        out_specs=pl.BlockSpec((1, Ho * Wo, TCo), lambda n, j: (n, 0, j)),
        compiler_params=pltpu.CompilerParams(
            dimension_semantics=("parallel", "parallel"),
            vmem_limit_bytes=vmem_limit),
    )(x, w, b)

    # Strip channel padding, restore (Ho, Wo), back to NCHW (PyTorch layout).
    out = out[:, :, :Cout].reshape(N, Ho, Wo, Cout)
    return jnp.transpose(out, (0, 3, 1, 2))


def init_l0_conv2d_params(key, c_in, c_out, kernel_size, groups=1, use_bias=True):
    """Deterministic init matching the module's __init__ shapes.

    weights: kaiming_normal_ (fan_in mode, gain sqrt(2)) over (c_out, c_in//groups, kh, kw).
    bias:    torch.Tensor(c_out) is uninitialized in the module; we use a small
             deterministic normal here (synthetic parameters).
    """
    kh, kw = kernel_size
    kw_key, b_key = jax.random.split(key)
    fan_in = (c_in // groups) * kh * kw
    std = float(np.sqrt(2.0 / fan_in))
    weights = std * jax.random.normal(kw_key, (c_out, c_in // groups, kh, kw), dtype=jnp.float32)
    bias = 0.01 * jax.random.normal(b_key, (c_out,), dtype=jnp.float32) if use_bias else None
    # NOTE: sparse_ratio / percentile / l0 mask only affect clamp_params(), not forward().
    return weights, bias


if __name__ == "__main__":
    key = jax.random.PRNGKey(0)
    x_key, p_key = jax.random.split(key)

    # Small shapes consistent with the module: N=2, c_in=4, c_out=8, 16x16 spatial,
    # kernel_size=3, stride=1, padding=1, dilation=1, groups=1, bias=True.
    N, C_IN, H, W = 2, 4, 16, 16
    C_OUT, K = 8, 3
    stride, padding, dilation, groups = (1, 1), (1, 1), (1, 1), 1

    x = jax.random.normal(x_key, (N, C_IN, H, W), dtype=jnp.float32)
    weights, bias = init_l0_conv2d_params(p_key, C_IN, C_OUT, (K, K), groups=groups, use_bias=True)

    out = l0_conv2d_forward(x, weights, bias, stride=stride, padding=padding,
                            dilation=dilation, groups=groups)
    out = jax.block_until_ready(out)

    # Cross-check against XLA's conv (same semantics as F.conv2d).
    ref = lax.conv_general_dilated(
        x, weights, window_strides=stride,
        padding=[(padding[0], padding[0]), (padding[1], padding[1])],
        rhs_dilation=dilation, feature_group_count=groups,
        dimension_numbers=("NCHW", "OIHW", "NCHW"))
    ref = ref + bias[None, :, None, None]

    assert out.shape == (N, C_OUT, H, W), out.shape
    np.testing.assert_allclose(np.asarray(out), np.asarray(ref), rtol=1e-5, atol=1e-5)

    print("KERNEL_OK")
</pallas_src>

<mosaic_0001>
module attributes {stable_mosaic.version = 11 : i64} {
  func.func @_conv2d_kernel(%arg0: i32, %arg1: i32, %arg2: memref<1x18x18x4xf32, #tpu.memory_space<vmem>>, %arg3: memref<9x4x128xf32, #tpu.memory_space<vmem>>, %arg4: memref<1x128xf32, #tpu.memory_space<vmem>>, %arg5: memref<1x256x128xf32, #tpu.memory_space<vmem>>) attributes {dimension_semantics = [#tpu.dimension_semantics<parallel>, #tpu.dimension_semantics<parallel>], iteration_bounds = array<i64: 2, 1>, scalar_prefetch = 0 : i64, scratch_operands = 0 : i64, tpu.core_type = #tpu.core_type<tc>, window_params = [{transform_indices = @transform_0, window_bounds = array<i64: 1, 18, 18, 4>}, {transform_indices = @transform_1, window_bounds = array<i64: 9, 4, 128>}, {transform_indices = @transform_2, window_bounds = array<i64: 1, 128>}, {transform_indices = @transform_3, window_bounds = array<i64: 1, 256, 128>}]} {
    %c0 = arith.constant 0 : index
    %c0_0 = arith.constant 0 : index
    %0 = vector.load %arg4[%c0, %c0_0] : memref<1x128xf32, #tpu.memory_space<vmem>>, vector<1x128xf32>
    %cst = arith.constant 0.000000e+00 : f32
    %1 = vector.broadcast %cst : f32 to vector<256x128xf32>
    %c0_1 = arith.constant 0 : index
    %c0_2 = arith.constant 0 : index
    %c0_3 = arith.constant 0 : index
    %c0_4 = arith.constant 0 : index
    %2 = vector.load %arg2[%c0_1, %c0_2, %c0_3, %c0_4] : memref<1x18x18x4xf32, #tpu.memory_space<vmem>>, vector<1x16x16x4xf32>
    %3 = vector.shape_cast %2 : vector<1x16x16x4xf32> to vector<16x16x4xf32>
    %4 = vector.shape_cast %3 : vector<16x16x4xf32> to vector<256x4xf32>
    %c0_5 = arith.constant 0 : index
    %c0_6 = arith.constant 0 : index
    %c0_7 = arith.constant 0 : index
    %5 = vector.load %arg3[%c0_5, %c0_6, %c0_7] : memref<9x4x128xf32, #tpu.memory_space<vmem>>, vector<1x4x128xf32>
    %6 = vector.shape_cast %5 : vector<1x4x128xf32> to vector<4x128xf32>
    %cst_8 = arith.constant dense<0.000000e+00> : vector<256x128xf32>
    %7 = tpu.matmul %4, %6, %cst_8 {dimension_numbers = #tpu.dot_dimension_numbers<[1], [0], [0], [1], [0, 0, 1, 1], [], []>} : vector<256x4xf32>, vector<4x128xf32>, vector<256x128xf32> -> vector<256x128xf32>
    %8 = arith.addf %1, %7 : vector<256x128xf32>
    %c0_9 = arith.constant 0 : index
    %c0_10 = arith.constant 0 : index
    %c1 = arith.constant 1 : index
    %c0_11 = arith.constant 0 : index
    %9 = vector.load %arg2[%c0_9, %c0_10, %c1, %c0_11] : memref<1x18x18x4xf32, #tpu.memory_space<vmem>>, vector<1x16x16x4xf32>
    %10 = vector.shape_cast %9 : vector<1x16x16x4xf32> to vector<16x16x4xf32>
    %11 = vector.shape_cast %10 : vector<16x16x4xf32> to vector<256x4xf32>
    %c1_12 = arith.constant 1 : index
    %c0_13 = arith.constant 0 : index
    %c0_14 = arith.constant 0 : index
    %12 = vector.load %arg3[%c1_12, %c0_13, %c0_14] : memref<9x4x128xf32, #tpu.memory_space<vmem>>, vector<1x4x128xf32>
    %13 = vector.shape_cast %12 : vector<1x4x128xf32> to vector<4x128xf32>
    %cst_15 = arith.constant dense<0.000000e+00> : vector<256x128xf32>
    %14 = tpu.matmul %11, %13, %cst_15 {dimension_numbers = #tpu.dot_dimension_numbers<[1], [0], [0], [1], [0, 0, 1, 1], [], []>} : vector<256x4xf32>, vector<4x128xf32>, vector<256x128xf32> -> vector<256x128xf32>
    %15 = arith.addf %8, %14 : vector<256x128xf32>
    %c0_16 = arith.constant 0 : index
    %c0_17 = arith.constant 0 : index
    %c2 = arith.constant 2 : index
    %c0_18 = arith.constant 0 : index
    %16 = vector.load %arg2[%c0_16, %c0_17, %c2, %c0_18] : memref<1x18x18x4xf32, #tpu.memory_space<vmem>>, vector<1x16x16x4xf32>
    %17 = vector.shape_cast %16 : vector<1x16x16x4xf32> to vector<16x16x4xf32>
    %18 = vector.shape_cast %17 : vector<16x16x4xf32> to vector<256x4xf32>
    %c2_19 = arith.constant 2 : index
    %c0_20 = arith.constant 0 : index
    %c0_21 = arith.constant 0 : index
    %19 = vector.load %arg3[%c2_19, %c0_20, %c0_21] : memref<9x4x128xf32, #tpu.memory_space<vmem>>, vector<1x4x128xf32>
    %20 = vector.shape_cast %19 : vector<1x4x128xf32> to vector<4x128xf32>
    %cst_22 = arith.constant dense<0.000000e+00> : vector<256x128xf32>
    %21 = tpu.matmul %18, %20, %cst_22 {dimension_numbers = #tpu.dot_dimension_numbers<[1], [0], [0], [1], [0, 0, 1, 1], [], []>} : vector<256x4xf32>, vector<4x128xf32>, vector<256x128xf32> -> vector<256x128xf32>
    %22 = arith.addf %15, %21 : vector<256x128xf32>
    %c0_23 = arith.constant 0 : index
    %c1_24 = arith.constant 1 : index
    %c0_25 = arith.constant 0 : index
    %c0_26 = arith.constant 0 : index
    %23 = vector.load %arg2[%c0_23, %c1_24, %c0_25, %c0_26] : memref<1x18x18x4xf32, #tpu.memory_space<vmem>>, vector<1x16x16x4xf32>
    %24 = vector.shape_cast %23 : vector<1x16x16x4xf32> to vector<16x16x4xf32>
    %25 = vector.shape_cast %24 : vector<16x16x4xf32> to vector<256x4xf32>
    %c3 = arith.constant 3 : index
    %c0_27 = arith.constant 0 : index
    %c0_28 = arith.constant 0 : index
    %26 = vector.load %arg3[%c3, %c0_27, %c0_28] : memref<9x4x128xf32, #tpu.memory_space<vmem>>, vector<1x4x128xf32>
    %27 = vector.shape_cast %26 : vector<1x4x128xf32> to vector<4x128xf32>
    %cst_29 = arith.constant dense<0.000000e+00> : vector<256x128xf32>
    %28 = tpu.matmul %25, %27, %cst_29 {dimension_numbers = #tpu.dot_dimension_numbers<[1], [0], [0], [1], [0, 0, 1, 1], [], []>} : vector<256x4xf32>, vector<4x128xf32>, vector<256x128xf32> -> vector<256x128xf32>
    %29 = arith.addf %22, %28 : vector<256x128xf32>
    %c0_30 = arith.constant 0 : index
    %c1_31 = arith.constant 1 : index
    %c1_32 = arith.constant 1 : index
    %c0_33 = arith.constant 0 : index
    %30 = vector.load %arg2[%c0_30, %c1_31, %c1_32, %c0_33] : memref<1x18x18x4xf32, #tpu.memory_space<vmem>>, vector<1x16x16x4xf32>
    %31 = vector.shape_cast %30 : vector<1x16x16x4xf32> to vector<16x16x4xf32>
    %32 = vector.shape_cast %31 : vector<16x16x4xf32> to vector<256x4xf32>
    %c4 = arith.constant 4 : index
    %c0_34 = arith.constant 0 : index
    %c0_35 = arith.constant 0 : index
    %33 = vector.load %arg3[%c4, %c0_34, %c0_35] : memref<9x4x128xf32, #tpu.memory_space<vmem>>, vector<1x4x128xf32>
    %34 = vector.shape_cast %33 : vector<1x4x128xf32> to vector<4x128xf32>
    %cst_36 = arith.constant dense<0.000000e+00> : vector<256x128xf32>
    %35 = tpu.matmul %32, %34, %cst_36 {dimension_numbers = #tpu.dot_dimension_numbers<[1], [0], [0], [1], [0, 0, 1, 1], [], []>} : vector<256x4xf32>, vector<4x128xf32>, vector<256x128xf32> -> vector<256x128xf32>
    %36 = arith.addf %29, %35 : vector<256x128xf32>
    %c0_37 = arith.constant 0 : index
    %c1_38 = arith.constant 1 : index
    %c2_39 = arith.constant 2 : index
    %c0_40 = arith.constant 0 : index
    %37 = vector.load %arg2[%c0_37, %c1_38, %c2_39, %c0_40] : memref<1x18x18x4xf32, #tpu.memory_space<vmem>>, vector<1x16x16x4xf32>
    %38 = vector.shape_cast %37 : vector<1x16x16x4xf32> to vector<16x16x4xf32>
    %39 = vector.shape_cast %38 : vector<16x16x4xf32> to vector<256x4xf32>
    %c5 = arith.constant 5 : index
    %c0_41 = arith.constant 0 : index
    %c0_42 = arith.constant 0 : index
    %40 = vector.load %arg3[%c5, %c0_41, %c0_42] : memref<9x4x128xf32, #tpu.memory_space<vmem>>, vector<1x4x128xf32>
    %41 = vector.shape_cast %40 : vector<1x4x128xf32> to vector<4x128xf32>
    %cst_43 = arith.constant dense<0.000000e+00> : vector<256x128xf32>
    %42 = tpu.matmul %39, %41, %cst_43 {dimension_numbers = #tpu.dot_dimension_numbers<[1], [0], [0], [1], [0, 0, 1, 1], [], []>} : vector<256x4xf32>, vector<4x128xf32>, vector<256x128xf32> -> vector<256x128xf32>
    %43 = arith.addf %36, %42 : vector<256x128xf32>
    %c0_44 = arith.constant 0 : index
    %c2_45 = arith.constant 2 : index
    %c0_46 = arith.constant 0 : index
    %c0_47 = arith.constant 0 : index
    %44 = vector.load %arg2[%c0_44, %c2_45, %c0_46, %c0_47] : memref<1x18x18x4xf32, #tpu.memory_space<vmem>>, vector<1x16x16x4xf32>
    %45 = vector.shape_cast %44 : vector<1x16x16x4xf32> to vector<16x16x4xf32>
    %46 = vector.shape_cast %45 : vector<16x16x4xf32> to vector<256x4xf32>
    %c6 = arith.constant 6 : index
    %c0_48 = arith.constant 0 : index
    %c0_49 = arith.constant 0 : index
    %47 = vector.load %arg3[%c6, %c0_48, %c0_49] : memref<9x4x128xf32, #tpu.memory_space<vmem>>, vector<1x4x128xf32>
    %48 = vector.shape_cast %47 : vector<1x4x128xf32> to vector<4x128xf32>
    %cst_50 = arith.constant dense<0.000000e+00> : vector<256x128xf32>
    %49 = tpu.matmul %46, %48, %cst_50 {dimension_numbers = #tpu.dot_dimension_numbers<[1], [0], [0], [1], [0, 0, 1, 1], [], []>} : vector<256x4xf32>, vector<4x128xf32>, vector<256x128xf32> -> vector<256x128xf32>
    %50 = arith.addf %43, %49 : vector<256x128xf32>
    %c0_51 = arith.constant 0 : index
    %c2_52 = arith.constant 2 : index
    %c1_53 = arith.constant 1 : index
    %c0_54 = arith.constant 0 : index
    %51 = vector.load %arg2[%c0_51, %c2_52, %c1_53, %c0_54] : memref<1x18x18x4xf32, #tpu.memory_space<vmem>>, vector<1x16x16x4xf32>
    %52 = vector.shape_cast %51 : vector<1x16x16x4xf32> to vector<16x16x4xf32>
    %53 = vector.shape_cast %52 : vector<16x16x4xf32> to vector<256x4xf32>
    %c7 = arith.constant 7 : index
    %c0_55 = arith.constant 0 : index
    %c0_56 = arith.constant 0 : index
    %54 = vector.load %arg3[%c7, %c0_55, %c0_56] : memref<9x4x128xf32, #tpu.memory_space<vmem>>, vector<1x4x128xf32>
    %55 = vector.shape_cast %54 : vector<1x4x128xf32> to vector<4x128xf32>
    %cst_57 = arith.constant dense<0.000000e+00> : vector<256x128xf32>
    %56 = tpu.matmul %53, %55, %cst_57 {dimension_numbers = #tpu.dot_dimension_numbers<[1], [0], [0], [1], [0, 0, 1, 1], [], []>} : vector<256x4xf32>, vector<4x128xf32>, vector<256x128xf32> -> vector<256x128xf32>
    %57 = arith.addf %50, %56 : vector<256x128xf32>
    %c0_58 = arith.constant 0 : index
    %c2_59 = arith.constant 2 : index
    %c2_60 = arith.constant 2 : index
    %c0_61 = arith.constant 0 : index
    %58 = vector.load %arg2[%c0_58, %c2_59, %c2_60, %c0_61] : memref<1x18x18x4xf32, #tpu.memory_space<vmem>>, vector<1x16x16x4xf32>
    %59 = vector.shape_cast %58 : vector<1x16x16x4xf32> to vector<16x16x4xf32>
    %60 = vector.shape_cast %59 : vector<16x16x4xf32> to vector<256x4xf32>
    %c8 = arith.constant 8 : index
    %c0_62 = arith.constant 0 : index
    %c0_63 = arith.constant 0 : index
    %61 = vector.load %arg3[%c8, %c0_62, %c0_63] : memref<9x4x128xf32, #tpu.memory_space<vmem>>, vector<1x4x128xf32>
    %62 = vector.shape_cast %61 : vector<1x4x128xf32> to vector<4x128xf32>
    %cst_64 = arith.constant dense<0.000000e+00> : vector<256x128xf32>
    %63 = tpu.matmul %60, %62, %cst_64 {dimension_numbers = #tpu.dot_dimension_numbers<[1], [0], [0], [1], [0, 0, 1, 1], [], []>} : vector<256x4xf32>, vector<4x128xf32>, vector<256x128xf32> -> vector<256x128xf32>
    %64 = arith.addf %57, %63 : vector<256x128xf32>
    %65 = vector.broadcast %0 : vector<1x128xf32> to vector<256x128xf32>
    %66 = arith.addf %64, %65 : vector<256x128xf32>
    %c0_65 = arith.constant 0 : index
    %c0_66 = arith.constant 0 : index
    %c0_67 = arith.constant 0 : index
    %67 = vector.load %arg5[%c0_65, %c0_66, %c0_67] : memref<1x256x128xf32, #tpu.memory_space<vmem>>, vector<1x256x128xf32>
    %68 = vector.shape_cast %67 : vector<1x256x128xf32> to vector<256x128xf32>
    %69 = vector.shape_cast %66 : vector<256x128xf32> to vector<1x256x128xf32>
    tpu.vector_store %arg5[%c0_65, %c0_66, %c0_67], %69 {strides = array<i32>} : memref<1x256x128xf32, #tpu.memory_space<vmem>>, vector<1x256x128xf32>,
    return
  }
  func.func @transform_0(%arg0: i32, %arg1: i32) -> (i32, i32, i32, i32) {
    %c0_i32 = arith.constant 0 : i32
    %c0_i32_0 = arith.constant 0 : i32
    %c0_i32_1 = arith.constant 0 : i32
    %c0_i32_2 = arith.constant 0 : i32
    return %arg0, %c0_i32, %c0_i32_0, %c0_i32_1 : i32, i32, i32, i32
  }
  func.func @transform_1(%arg0: i32, %arg1: i32) -> (i32, i32, i32) {
    %c0_i32 = arith.constant 0 : i32
    %c0_i32_0 = arith.constant 0 : i32
    %c0_i32_1 = arith.constant 0 : i32
    return %c0_i32, %c0_i32_0, %arg1 : i32, i32, i32
  }
  func.func @transform_2(%arg0: i32, %arg1: i32) -> (i32, i32) {
    %c0_i32 = arith.constant 0 : i32
    %c0_i32_0 = arith.constant 0 : i32
    return %c0_i32, %arg1 : i32, i32
  }
  func.func @transform_3(%arg0: i32, %arg1: i32) -> (i32, i32, i32) {
    %c0_i32 = arith.constant 0 : i32
    %c0_i32_0 = arith.constant 0 : i32
    return %arg0, %c0_i32, %arg1 : i32, i32, i32
  }
}

</mosaic_0001>

<llo_original>
// kernel: tpu_custom_call.1
$region0: #{tpu_custom_call.1}
  #allocation0 [shape = 'u32[]', space=smem, size = 0x4, offset = 0x4, fixed_abs, tag = 'smem constant byte address 0x4 - core index']
  #allocation1 [shape = 'u32[72,128]{1,0:T(1,128)}', space=vmem, size = 0x9000, scoped, tag = 'internal scratch']
  %s0 = inlined_call_operand.vmem [shape: f32[2,18,18,4], index: 0, kind: input, shape index: {}]
  %s1 = inlined_call_operand.vmem [shape: f32[9,4,128], index: 1, kind: input, shape index: {}]
  %s2 = inlined_call_operand.vmem [shape: f32[1,128], index: 2, kind: input, shape index: {}]
  %s3 = inlined_call_operand.hbm [shape: f32[2,256,128], index: 3, kind: output, shape index: {}]
  %s4 = sld [smem:[#allocation0]]
  $region45: #{tpu_custom_call.1} parent=0
    _
  %s6 = ssub.s32 1, %s4
  %s7 = scalar_select 0, %s6, %s4
  $region1: #{tpu_custom_call.1} parent=0
    #allocation2 [shape = 'u8[262144]{0}', space=vmem, size = 0x40000, scoped, tag = 'output window, operand 0']
    #allocation3 [shape = 's32[2]{0}', space=sflag, size = 0x8, scoped, tag = 'scoped memory for tpu_custom_call.1']
    %8 = vsyncpa [#allocation3], 0
    %s9 = scalar_lea.sflag [#allocation3], 1
    %10 = vsyncpa %s9, 0
    loop: start=0, step=1, limit=4
    $region2: #{tpu_custom_call.1} parent=1 // loop_pre_header
      _
    $region3: #{tpu_custom_call.1} parent=1 // loop_header
      %s12 = sphi 0, %s16
      %p13 = scmp.ge.s32.totalorder %s12, 4
      %s19 = sphi 0, %s31
      %s20 = sphi 0, %s27
      %s21 = sphi 0, %s19
      %s22 = sphi 0, %s20
      %s23 = sphi 0, %s21
      %s24 = sphi 0, %s22
      %s34 = sphi 0, %s36
      %s37 = sphi 0, %s34
      %s38 = sphi 0, %s37
      %s54 = sphi 0, %s38
      %s60 = sphi 0, %s62
      %s63 = sphi 0, %s60
      %s64 = sphi 0, %s63
      %s80 = sphi 0, %s64
      %s86 = sphi 0, %s88
      %s89 = sphi 0, %s86
      %s90 = sphi 0, %s89
      %s106 = sphi 0, %s90
      %s114 = sphi 0, %s116
      %s117 = sphi 0, %s114
      %s118 = sphi 0, %s117
      %s134 = sphi 0, %s118
    $region4: #{tpu_custom_call.1} parent=1 // loop_header_branch
      %15 = sbr.rel (%p13) target = $region8
    $region5: #{tpu_custom_call.1} parent=1 // loop_body
      %s17 = ssub.s32 %s12, 1
      %s18 = ssub.s32 %s12, 2
      %s25 = sadd.s32 1, %s20
      %p26 = scmp.ge.s32.totalorder %s25, 1
      %s27 = scalar_select %p26, 0, %s25
      %s28 = sadd.s32 1, %s19
      %s29 = scalar_select %p26, %s28, %s19
      %p30 = scmp.ge.s32.totalorder %s29, 2
      %s31 = scalar_select %p30, 0, %s29
      %s32 = ssub.s32 %s19, %s31
      %p33 = scmp.eq.s32.totalorder %s32, 0
      %s35 = sadd.s32 %s34, 1
      %s36 = scalar_select %p33, %s34, %s35
      %p39 = pneg %p33
      %p40 = scmp.eq.s32.totalorder %s12, 1
      %p41 = por %p39, %p40
      %p42 = scmp.ne.s32.totalorder %s34, %s37
      %p43 = scmp.eq.s32.totalorder %s12, 0
      %p44 = por %p42, %p43
      %p45 = scmp.ne.s32.totalorder %s34, %s37
      %p46 = scmp.eq.s32.totalorder %s17, 1
      %p47 = por %p45, %p46
      %p48 = scmp.ne.s32.totalorder %s37, %s38
      %p49 = scmp.eq.s32.totalorder %s17, 0
      %p50 = por %p48, %p49
      %p51 = scmp.ne.s32.totalorder %s37, %s38
      %p52 = scmp.eq.s32.totalorder %s18, 1
      %p53 = por %p51, %p52
      %p55 = scmp.ne.s32.totalorder %s38, %s54
      %p56 = scmp.eq.s32.totalorder %s18, 0
      %p57 = por %p55, %p56
      %s58 = ssub.s32 %s20, %s27
      %p59 = scmp.eq.s32.totalorder %s58, 0
      %s61 = sadd.s32 %s60, 1
      %s62 = scalar_select %p59, %s60, %s61
      %p65 = pneg %p59
      %p66 = scmp.eq.s32.totalorder %s12, 1
      %p67 = por %p65, %p66
      %p68 = scmp.ne.s32.totalorder %s60, %s63
      %p69 = scmp.eq.s32.totalorder %s12, 0
      %p70 = por %p68, %p69
      %p71 = scmp.ne.s32.totalorder %s60, %s63
      %p72 = scmp.eq.s32.totalorder %s17, 1
      %p73 = por %p71, %p72
      %p74 = scmp.ne.s32.totalorder %s63, %s64
      %p75 = scmp.eq.s32.totalorder %s17, 0
      %p76 = por %p74, %p75
      %p77 = scmp.ne.s32.totalorder %s63, %s64
      %p78 = scmp.eq.s32.totalorder %s18, 1
      %p79 = por %p77, %p78
      %p81 = scmp.ne.s32.totalorder %s64, %s80
      %p82 = scmp.eq.s32.totalorder %s18, 0
      %p83 = por %p81, %p82
      %s84 = ssub.s32 %s20, %s27
      %p85 = scmp.eq.s32.totalorder %s84, 0
      %s87 = sadd.s32 %s86, 1
      %s88 = scalar_select %p85, %s86, %s87
      %p91 = pneg %p85
      %p92 = scmp.eq.s32.totalorder %s12, 1
      %p93 = por %p91, %p92
      %p94 = scmp.ne.s32.totalorder %s86, %s89
      %p95 = scmp.eq.s32.totalorder %s12, 0
      %p96 = por %p94, %p95
      %p97 = scmp.ne.s32.totalorder %s86, %s89
      %p98 = scmp.eq.s32.totalorder %s17, 1
      %p99 = por %p97, %p98
      %p100 = scmp.ne.s32.totalorder %s89, %s90
      %p101 = scmp.eq.s32.totalorder %s17, 0
      %p102 = por %p100, %p101
      %p103 = scmp.ne.s32.totalorder %s89, %s90
      %p104 = scmp.eq.s32.totalorder %s18, 1
      %p105 = por %p103, %p104
      %p107 = scmp.ne.s32.totalorder %s90, %s106
      %p108 = scmp.eq.s32.totalorder %s18, 0
      %p109 = por %p107, %p108
      %s110 = ssub.s32 %s19, %s31
      %s111 = ssub.s32 %s20, %s27
      %s112 = sor.u32 %s110, %s111
      %p113 = scmp.eq.s32.totalorder %s112, 0
      %s115 = sadd.s32 %s114, 1
      %s116 = scalar_select %p113, %s114, %s115
      %p119 = pneg %p113
      %p120 = scmp.eq.s32.totalorder %s12, 1
      %p121 = por %p119, %p120
      %p122 = scmp.ne.s32.totalorder %s114, %s117
      %p123 = scmp.eq.s32.totalorder %s12, 0
      %p124 = por %p122, %p123
      %p125 = scmp.ne.s32.totalorder %s114, %s117
      %p126 = scmp.eq.s32.totalorder %s17, 1
      %p127 = por %p125, %p126
      %p128 = scmp.ne.s32.totalorder %s117, %s118
      %p129 = scmp.eq.s32.totalorder %s17, 0
      %p130 = por %p128, %p129
      %p131 = scmp.ne.s32.totalorder %s117, %s118
      %p132 = scmp.eq.s32.totalorder %s18, 1
      %p133 = por %p131, %p132
      %p135 = scmp.ne.s32.totalorder %s118, %s134
      %p136 = scmp.eq.s32.totalorder %s18, 0
      %p137 = por %p135, %p136
      %p138 = scmp.le.s32.totalorder 1, %s12
      %p139 = scmp.lt.s32.totalorder %s12, 3
      %p140 = pnand %p138, %p139
      %p141 = pneg %p140
      // Predicated region
      $region9: #{tpu_custom_call.1} parent=5 // pred_check
        _
      $region10: #{tpu_custom_call.1} parent=5 // pred_check_branch
        %143 = sbr.rel (%p140) target = $region12
      $region11: #{tpu_custom_call.1} parent=5 // pred_region
        %s144 = ssub.s32 %s12, 1
        // Predicated region
        $region13: #{tpu_custom_call.1} parent=11 // pred_check
          %p145 = pneg %p76
        $region14: #{tpu_custom_call.1} parent=11 // pred_check_branch
          %147 = sbr.rel (%p145) target = $region16
        $region15: #{tpu_custom_call.1} parent=11 // pred_region
          %p148 = scmp.lt.s32.totalorder %s22, 0
          %s149 = scalar_select %p148, %s22, 0
          %s150 = smul.addr %s149, 4
          %s151 = scalar_lea.vmem %s1, %s150
        $region16: #{tpu_custom_call.1} parent=11 // pred_fallthru
          _
        // Predicated region
        $region17: #{tpu_custom_call.1} parent=11 // pred_check
          %p152 = pneg %p102
        $region18: #{tpu_custom_call.1} parent=11 // pred_check_branch
          %154 = sbr.rel (%p152) target = $region20
        $region19: #{tpu_custom_call.1} parent=11 // pred_region
          %p155 = scmp.lt.s32.totalorder %s22, 0
          %s156 = scalar_select %p155, %s22, 0
          %s157 = scalar_lea.vmem %s2, %s156
        $region20: #{tpu_custom_call.1} parent=11 // pred_fallthru
          _
      $region12: #{tpu_custom_call.1} parent=5 // pred_fallthru
        _
      %p158 = scmp.lt.s32.totalorder %s12, 2
      // Predicated region
      $region21: #{tpu_custom_call.1} parent=5 // pred_check
        %p159 = pneg %p158
      $region22: #{tpu_custom_call.1} parent=5 // pred_check_branch
        %161 = sbr.rel (%p159) target = $region24
      $region23: #{tpu_custom_call.1} parent=5 // pred_region
        // Predicated region
        $region25: #{tpu_custom_call.1} parent=23 // pred_check
          %p162 = pneg %p44
        $region26: #{tpu_custom_call.1} parent=23 // pred_check_branch
          %164 = sbr.rel (%p162) target = $region28
        $region27: #{tpu_custom_call.1} parent=23 // pred_region
          %p165 = scmp.lt.s32.totalorder %s19, 1
          %s166 = scalar_select %p165, %s19, 1
          %s167 = smul.addr %s166, 54
          %s168 = smul.addr %s167, 8
          %s169 = scalar_lea.vmem %s0, %s168
        $region28: #{tpu_custom_call.1} parent=23 // pred_fallthru
          _
      $region24: #{tpu_custom_call.1} parent=5 // pred_fallthru
        _
      %p170 = scmp.le.s32.totalorder 1, %s12
      %p171 = scmp.lt.s32.totalorder %s12, 3
      %p172 = pnand %p170, %p171
      %p173 = pneg %p172
      // Predicated region
      $region29: #{tpu_custom_call.1} parent=5 // pred_check
        _
      $region30: #{tpu_custom_call.1} parent=5 // pred_check_branch
        %175 = sbr.rel (%p172) target = $region32
      $region31: #{tpu_custom_call.1} parent=5 // pred_region
        %s176 = ssub.s32 %s12, 1
        %p177 = scmp.lt.s32.totalorder %s21, 1
        %s178 = scalar_select %p177, %s21, 1
        %s179 = smul.addr %s178, 54
        %s180 = smul.addr %s179, 8
        %s181 = scalar_lea.vmem %s0, %s180
        %p182 = pneg %p50
        %p183 = pneg %p47
        %p184 = scmp.lt.s32.totalorder %s22, 0
        %s185 = scalar_select %p184, %s22, 0
        %s186 = smul.addr %s185, 4
        %s187 = scalar_lea.vmem %s1, %s186
        %p188 = pneg %p76
        %p189 = pneg %p73
        %p190 = scmp.lt.s32.totalorder %s22, 0
        %s191 = scalar_select %p190, %s22, 0
        %s192 = scalar_lea.vmem %s2, %s191
        %p193 = pneg %p102
        %p194 = pneg %p99
        %p195 = pneg %p130
        %p196 = pneg %p127
        %s197 = sand.u32 %s117, 1
        %s198 = scalar_lea.sflag [#allocation3], %s197
        %s199 = sand.u32 %s117, 1
        %s200 = smul.addr %s199, 256
        %s201 = scalar_lea.vmem [#allocation2], %s200
        %p202 = scmp.lt.s32.totalorder %s21, 1
        %s203 = scalar_select %p202, %s21, 1
        %s204 = smul.addr %s203, 54
        %s205 = smul.addr %s204, 8
        %s206 = scalar_lea.vmem %s0, %s205
        %p207 = scmp.lt.s32.totalorder %s22, 0
        %s208 = scalar_select %p207, %s22, 0
        %s209 = smul.addr %s208, 4
        %s210 = scalar_lea.vmem %s1, %s209
        %p211 = scmp.lt.s32.totalorder %s22, 0
        %s212 = scalar_select %p211, %s22, 0
        %s213 = scalar_lea.vmem %s2, %s212
        %v214 = vld [vmem:[%s213] sm:$0x1]
        %v215 = vld [vmem:[%s206] sm:$0xff]
        %v216 = vld [vmem:[%s206 + $0x8] sm:$0xff]
        %v217 = vld [vmem:[%s206 + $0x18] sm:$0xff]
        %v218 = vld [vmem:[%s206 + $0x20] sm:$0xff]
        %v219 = vld [vmem:[%s206 + $0x30] sm:$0xff]
        %v220 = vld [vmem:[%s206 + $0x38] sm:$0xff]
        %v221 = vld [vmem:[%s206 + $0x48] sm:$0xff]
        %v222 = vld [vmem:[%s206 + $0x50] sm:$0xff]
        %v223 = vld [vmem:[%s206 + $0x60] sm:$0xff]
        %v224 = vld [vmem:[%s206 + $0x68] sm:$0xff]
        %v225 = vld [vmem:[%s206 + $0x78] sm:$0xff]
        %v226 = vld [vmem:[%s206 + $0x80] sm:$0xff]
        %v227 = vld [vmem:[%s206 + $0x90] sm:$0xff]
        %v228 = vld [vmem:[%s206 + $0x98] sm:$0xff]
        %v229 = vld [vmem:[%s206 + $0xa8] sm:$0xff]
        %v230 = vld [vmem:[%s206 + $0xb0] sm:$0xff]
        %v231 = vld [vmem:[%s206 + $0xc0] sm:$0xff]
        %v232 = vld [vmem:[%s206 + $0xc8] sm:$0xff]
        %v233 = vld [vmem:[%s206 + $0xd8] sm:$0xff]
        %v234 = vld [vmem:[%s206 + $0xe0] sm:$0xff]
        %v235 = vld [vmem:[%s206 + $0xf0] sm:$0xff]
        %v236 = vld [vmem:[%s206 + $0xf8] sm:$0xff]
        %v237 = vld [vmem:[%s206 + $0x108] sm:$0xff]
        %v238 = vld [vmem:[%s206 + $0x110] sm:$0xff]
        %v239 = vld [vmem:[%s206 + $0x120] sm:$0xff]
        %v240 = vld [vmem:[%s206 + $0x128] sm:$0xff]
        %v241 = vld [vmem:[%s206 + $0x138] sm:$0xff]
        %v242 = vld [vmem:[%s206 + $0x140] sm:$0xff]
        %v243 = vld [vmem:[%s206 + $0x150] sm:$0xff]
        %v244 = vld [vmem:[%s206 + $0x158] sm:$0xff]
        %v245 = vld [vmem:[%s206 + $0x168] sm:$0xff]
        %v246 = vld [vmem:[%s206 + $0x170] sm:$0xff]
        %v247 = vld [vmem:[%s210] sm:$0xf]
        %v248 = vld [vmem:[%s206 + $0x1] sm:$0xff]
        %v249 = vld [vmem:[%s206 + $0x9] sm:$0xff]
        %v250 = vld [vmem:[%s206 + $0x19] sm:$0xff]
        %v251 = vld [vmem:[%s206 + $0x21] sm:$0xff]
        %v252 = vld [vmem:[%s206 + $0x31] sm:$0xff]
        %v253 = vld [vmem:[%s206 + $0x39] sm:$0xff]
        %v254 = vld [vmem:[%s206 + $0x49] sm:$0xff]
        %v255 = vld [vmem:[%s206 + $0x51] sm:$0xff]
        %v256 = vld [vmem:[%s206 + $0x61] sm:$0xff]
        %v257 = vld [vmem:[%s206 + $0x69] sm:$0xff]
        %v258 = vld [vmem:[%s206 + $0x79] sm:$0xff]
        %v259 = vld [vmem:[%s206 + $0x81] sm:$0xff]
        %v260 = vld [vmem:[%s206 + $0x91] sm:$0xff]
        %v261 = vld [vmem:[%s206 + $0x99] sm:$0xff]
        %v262 = vld [vmem:[%s206 + $0xa9] sm:$0xff]
        %v263 = vld [vmem:[%s206 + $0xb1] sm:$0xff]
        %v264 = vld [vmem:[%s206 + $0xc1] sm:$0xff]
        %v265 = vld [vmem:[%s206 + $0xc9] sm:$0xff]
        %v266 = vld [vmem:[%s206 + $0xd9] sm:$0xff]
        %v267 = vld [vmem:[%s206 + $0xe1] sm:$0xff]
        %v268 = vld [vmem:[%s206 + $0xf1] sm:$0xff]
        %v269 = vld [vmem:[%s206 + $0xf9] sm:$0xff]
        %v270 = vld [vmem:[%s206 + $0x109] sm:$0xff]
        %v271 = vld [vmem:[%s206 + $0x111] sm:$0xff]
        %v272 = vld [vmem:[%s206 + $0x121] sm:$0xff]
        %v273 = vld [vmem:[%s206 + $0x129] sm:$0xff]
        %v274 = vld [vmem:[%s206 + $0x139] sm:$0xff]
        %v275 = vld [vmem:[%s206 + $0x141] sm:$0xff]
        %v276 = vld [vmem:[%s206 + $0x151] sm:$0xff]
        %v277 = vld [vmem:[%s206 + $0x159] sm:$0xff]
        %v278 = vld [vmem:[%s206 + $0x169] sm:$0xff]
        %v279 = vld [vmem:[%s206 + $0x171] sm:$0xff]
        %s280 = scalar_lea.vmem %s210, 4
        %v281 = vld [vmem:[%s280] sm:$0xf]
        %vm282 = vcmask 31744
        %v284 = vsel %vm282, %v248, 0
        %v287 = vsel %vm282, %v249, 0
        %v290 = vsel %vm282, %v250, 0
        %v293 = vsel %vm282, %v251, 0
        %v296 = vsel %vm282, %v252, 0
        %v299 = vsel %vm282, %v253, 0
        %v302 = vsel %vm282, %v254, 0
        %v305 = vsel %vm282, %v255, 0
        %v308 = vsel %vm282, %v256, 0
        %v311 = vsel %vm282, %v257, 0
        %v314 = vsel %vm282, %v258, 0
        %v317 = vsel %vm282, %v259, 0
        %v320 = vsel %vm282, %v260, 0
        %v323 = vsel %vm282, %v261, 0
        %v326 = vsel %vm282, %v262, 0
        %v329 = vsel %vm282, %v263, 0
        %v332 = vsel %vm282, %v264, 0
        %v335 = vsel %vm282, %v265, 0
        %v338 = vsel %vm282, %v266, 0
        %v341 = vsel %vm282, %v267, 0
        %v344 = vsel %vm282, %v268, 0
        %v347 = vsel %vm282, %v269, 0
        %v350 = vsel %vm282, %v270, 0
        %v353 = vsel %vm282, %v271, 0
        %v356 = vsel %vm282, %v272, 0
        %v359 = vsel %vm282, %v273, 0
        %v362 = vsel %vm282, %v274, 0
        %v365 = vsel %vm282, %v275, 0
        %v368 = vsel %vm282, %v276, 0
        %v371 = vsel %vm282, %v277, 0
        %v374 = vsel %vm282, %v278, 0
        %v377 = vsel %vm282, %v279, 0
        %vm379 = vcmask 1043456
        %v381 = vsel %vm379, %v281, 0
        %383 = vmatpush.msra.mxu0 0.0
        %384 = vmatpush.msra.mxu0 0.0
        %385 = vmatpush.msra.mxu0 0.0
        %386 = vmatpush.msra.mxu0 0.0
        %387 = vmatpush.msra.mxu0 0.0
        %388 = vmatpush.msra.mxu0 0.0
        %389 = vmatpush.msra.mxu0 0.0
        %390 = vmatpush.msra.mxu0 0.0
        %391 = vmatpush.msra.mxu0 0.0
        %392 = vmatpush.msra.mxu0 0.0
        %393 = vmatpush.msra.mxu0 0.0
        %394 = vmatpush.msra.mxu0 0.0
        %395 = vmatpush.msra.mxu0 0.0
        %396 = vmatpush.msra.mxu0 0.0
        %397 = vmatpush.msra.mxu0 0.0
        %398 = vmatpush.msra.mxu0 %v381
        %399 = vmatmul.f32.gmra.mxu0 %v284
        %v400 = vpop.f32.mrf.mxu0
        %v401 = vadd.f32 0.0, %v400
        %402 = vmatmul.f32.gmra.mxu0 %v287
        %v403 = vpop.f32.mrf.mxu0
        %v404 = vadd.f32 0.0, %v403
        %405 = vmatmul.f32.gmra.mxu0 %v290
        %v406 = vpop.f32.mrf.mxu0
        %v407 = vadd.f32 0.0, %v406
        %408 = vmatmul.f32.gmra.mxu0 %v293
        %v409 = vpop.f32.mrf.mxu0
        %v410 = vadd.f32 0.0, %v409
        %411 = vmatmul.f32.gmra.mxu0 %v296
        %v412 = vpop.f32.mrf.mxu0
        %v413 = vadd.f32 0.0, %v412
        %414 = vmatmul.f32.gmra.mxu0 %v299
        %v415 = vpop.f32.mrf.mxu0
        %v416 = vadd.f32 0.0, %v415
        %417 = vmatmul.f32.gmra.mxu0 %v302
        %v418 = vpop.f32.mrf.mxu0
        %v419 = vadd.f32 0.0, %v418
        %420 = vmatmul.f32.gmra.mxu0 %v305
        %v421 = vpop.f32.mrf.mxu0
        %v422 = vadd.f32 0.0, %v421
        %423 = vmatmul.f32.gmra.mxu0 %v308
        %v424 = vpop.f32.mrf.mxu0
        %v425 = vadd.f32 0.0, %v424
        %426 = vmatmul.f32.gmra.mxu0 %v311
        %v427 = vpop.f32.mrf.mxu0
        %v428 = vadd.f32 0.0, %v427
        %429 = vmatmul.f32.gmra.mxu0 %v314
        %v430 = vpop.f32.mrf.mxu0
        %v431 = vadd.f32 0.0, %v430
        %432 = vmatmul.f32.gmra.mxu0 %v317
        %v433 = vpop.f32.mrf.mxu0
        %v434 = vadd.f32 0.0, %v433
        %435 = vmatmul.f32.gmra.mxu0 %v320
        %v436 = vpop.f32.mrf.mxu0
        %v437 = vadd.f32 0.0, %v436
        %438 = vmatmul.f32.gmra.mxu0 %v323
        %v439 = vpop.f32.mrf.mxu0
        %v440 = vadd.f32 0.0, %v439
        %441 = vmatmul.f32.gmra.mxu0 %v326
        %v442 = vpop.f32.mrf.mxu0
        %v443 = vadd.f32 0.0, %v442
        %444 = vmatmul.f32.gmra.mxu0 %v329
        %v445 = vpop.f32.mrf.mxu0
        %v446 = vadd.f32 0.0, %v445
        %447 = vmatmul.f32.gmra.mxu0 %v332
        %v448 = vpop.f32.mrf.mxu0
        %v449 = vadd.f32 0.0, %v448
        %450 = vmatmul.f32.gmra.mxu0 %v335
        %v451 = vpop.f32.mrf.mxu0
        %v452 = vadd.f32 0.0, %v451
        %453 = vmatmul.f32.gmra.mxu0 %v338
        %v454 = vpop.f32.mrf.mxu0
        %v455 = vadd.f32 0.0, %v454
        %456 = vmatmul.f32.gmra.mxu0 %v341
        %v457 = vpop.f32.mrf.mxu0
        %v458 = vadd.f32 0.0, %v457
        %459 = vmatmul.f32.gmra.mxu0 %v344
        %v460 = vpop.f32.mrf.mxu0
        %v461 = vadd.f32 0.0, %v460
        %462 = vmatmul.f32.gmra.mxu0 %v347
        %v463 = vpop.f32.mrf.mxu0
        %v464 = vadd.f32 0.0, %v463
        %465 = vmatmul.f32.gmra.mxu0 %v350
        %v466 = vpop.f32.mrf.mxu0
        %v467 = vadd.f32 0.0, %v466
        %468 = vmatmul.f32.gmra.mxu0 %v353
        %v469 = vpop.f32.mrf.mxu0
        %v470 = vadd.f32 0.0, %v469
        %471 = vmatmul.f32.gmra.mxu0 %v356
        %v472 = vpop.f32.mrf.mxu0
        %v473 = vadd.f32 0.0, %v472
        %474 = vmatmul.f32.gmra.mxu0 %v359
        %v475 = vpop.f32.mrf.mxu0
        %v476 = vadd.f32 0.0, %v475
        %477 = vmatmul.f32.gmra.mxu0 %v362
        %v478 = vpop.f32.mrf.mxu0
        %v479 = vadd.f32 0.0, %v478
        %480 = vmatmul.f32.gmra.mxu0 %v365
        %v481 = vpop.f32.mrf.mxu0
        %v482 = vadd.f32 0.0, %v481
        %483 = vmatmul.f32.gmra.mxu0 %v368
        %v484 = vpop.f32.mrf.mxu0
        %v485 = vadd.f32 0.0, %v484
        %486 = vmatmul.f32.gmra.mxu0 %v371
        %v487 = vpop.f32.mrf.mxu0
        %v488 = vadd.f32 0.0, %v487
        %489 = vmatmul.f32.gmra.mxu0 %v374
        %v490 = vpop.f32.mrf.mxu0
        %v491 = vadd.f32 0.0, %v490
        %492 = vmatmul.f32.gmra.mxu0 %v377
        %v493 = vpop.f32.mrf.mxu0
        %v494 = vadd.f32 0.0, %v493
        %495 = vdwg.mxu0
        %v497 = vsel %vm282, %v215, 0
        %v500 = vsel %vm282, %v216, 0
        %v503 = vsel %vm282, %v217, 0
        %v506 = vsel %vm282, %v218, 0
        %v509 = vsel %vm282, %v219, 0
        %v512 = vsel %vm282, %v220, 0
        %v515 = vsel %vm282, %v221, 0
        %v518 = vsel %vm282, %v222, 0
        %v521 = vsel %vm282, %v223, 0
        %v524 = vsel %vm282, %v224, 0
        %v527 = vsel %vm282, %v225, 0
        %v530 = vsel %vm282, %v226, 0
        %v533 = vsel %vm282, %v227, 0
        %v536 = vsel %vm282, %v228, 0
        %v539 = vsel %vm282, %v229, 0
        %v542 = vsel %vm282, %v230, 0
        %v545 = vsel %vm282, %v231, 0
        %v548 = vsel %vm282, %v232, 0
        %v551 = vsel %vm282, %v233, 0
        %v554 = vsel %vm282, %v234, 0
        %v557 = vsel %vm282, %v235, 0
        %v560 = vsel %vm282, %v236, 0
        %v563 = vsel %vm282, %v237, 0
        %v566 = vsel %vm282, %v238, 0
        %v569 = vsel %vm282, %v239, 0
        %v572 = vsel %vm282, %v240, 0
        %v575 = vsel %vm282, %v241, 0
        %v578 = vsel %vm282, %v242, 0
        %v581 = vsel %vm282, %v243, 0
        %v584 = vsel %vm282, %v244, 0
        %v587 = vsel %vm282, %v245, 0
        %v590 = vsel %vm282, %v246, 0
        %v593 = vsel %vm379, %v247, 0
        %595 = vmatpush.msra.mxu0 0.0
        %596 = vmatpush.msra.mxu0 0.0
        %597 = vmatpush.msra.mxu0 0.0
        %598 = vmatpush.msra.mxu0 0.0
        %599 = vmatpush.msra.mxu0 0.0
        %600 = vmatpush.msra.mxu0 0.0
        %601 = vmatpush.msra.mxu0 0.0
        %602 = vmatpush.msra.mxu0 0.0
        %603 = vmatpush.msra.mxu0 0.0
        %604 = vmatpush.msra.mxu0 0.0
        %605 = vmatpush.msra.mxu0 0.0
        %606 = vmatpush.msra.mxu0 0.0
        %607 = vmatpush.msra.mxu0 0.0
        %608 = vmatpush.msra.mxu0 0.0
        %609 = vmatpush.msra.mxu0 0.0
        %610 = vmatpush.msra.mxu0 %v593
        %611 = vmatmul.f32.gmra.mxu0 %v497
        %v612 = vpop.f32.mrf.mxu0
        %v613 = vadd.f32 %v401, %v612
        %614 = vmatmul.f32.gmra.mxu0 %v500
        %v615 = vpop.f32.mrf.mxu0
        %v616 = vadd.f32 %v404, %v615
        %617 = vmatmul.f32.gmra.mxu0 %v503
        %v618 = vpop.f32.mrf.mxu0
        %v619 = vadd.f32 %v407, %v618
        %620 = vmatmul.f32.gmra.mxu0 %v506
        %v621 = vpop.f32.mrf.mxu0
        %v622 = vadd.f32 %v410, %v621
        %623 = vmatmul.f32.gmra.mxu0 %v509
        %v624 = vpop.f32.mrf.mxu0
        %v625 = vadd.f32 %v413, %v624
        %626 = vmatmul.f32.gmra.mxu0 %v512
        %v627 = vpop.f32.mrf.mxu0
        %v628 = vadd.f32 %v416, %v627
        %629 = vmatmul.f32.gmra.mxu0 %v515
        %v630 = vpop.f32.mrf.mxu0
        %v631 = vadd.f32 %v419, %v630
        %632 = vmatmul.f32.gmra.mxu0 %v518
        %v633 = vpop.f32.mrf.mxu0
        %v634 = vadd.f32 %v422, %v633
        %635 = vmatmul.f32.gmra.mxu0 %v521
        %v636 = vpop.f32.mrf.mxu0
        %v637 = vadd.f32 %v425, %v636
        %638 = vmatmul.f32.gmra.mxu0 %v524
        %v639 = vpop.f32.mrf.mxu0
        %v640 = vadd.f32 %v428, %v639
        %641 = vmatmul.f32.gmra.mxu0 %v527
        %v642 = vpop.f32.mrf.mxu0
        %v643 = vadd.f32 %v431, %v642
        %644 = vmatmul.f32.gmra.mxu0 %v530
        %v645 = vpop.f32.mrf.mxu0
        %v646 = vadd.f32 %v434, %v645
        %647 = vmatmul.f32.gmra.mxu0 %v533
        %v648 = vpop.f32.mrf.mxu0
        %v649 = vadd.f32 %v437, %v648
        %650 = vmatmul.f32.gmra.mxu0 %v536
        %v651 = vpop.f32.mrf.mxu0
        %v652 = vadd.f32 %v440, %v651
        %653 = vmatmul.f32.gmra.mxu0 %v539
        %v654 = vpop.f32.mrf.mxu0
        %v655 = vadd.f32 %v443, %v654
        %656 = vmatmul.f32.gmra.mxu0 %v542
        %v657 = vpop.f32.mrf.mxu0
        %v658 = vadd.f32 %v446, %v657
        %659 = vmatmul.f32.gmra.mxu0 %v545
        %v660 = vpop.f32.mrf.mxu0
        %v661 = vadd.f32 %v449, %v660
        %662 = vmatmul.f32.gmra.mxu0 %v548
        %v663 = vpop.f32.mrf.mxu0
        %v664 = vadd.f32 %v452, %v663
        %665 = vmatmul.f32.gmra.mxu0 %v551
        %v666 = vpop.f32.mrf.mxu0
        %v667 = vadd.f32 %v455, %v666
        %668 = vmatmul.f32.gmra.mxu0 %v554
        %v669 = vpop.f32.mrf.mxu0
        %v670 = vadd.f32 %v458, %v669
        %671 = vmatmul.f32.gmra.mxu0 %v557
        %v672 = vpop.f32.mrf.mxu0
        %v673 = vadd.f32 %v461, %v672
        %674 = vmatmul.f32.gmra.mxu0 %v560
        %v675 = vpop.f32.mrf.mxu0
        %v676 = vadd.f32 %v464, %v675
        %677 = vmatmul.f32.gmra.mxu0 %v563
        %v678 = vpop.f32.mrf.mxu0
        %v679 = vadd.f32 %v467, %v678
        %680 = vmatmul.f32.gmra.mxu0 %v566
        %v681 = vpop.f32.mrf.mxu0
        %v682 = vadd.f32 %v470, %v681
        %683 = vmatmul.f32.gmra.mxu0 %v569
        %v684 = vpop.f32.mrf.mxu0
        %v685 = vadd.f32 %v473, %v684
        %686 = vmatmul.f32.gmra.mxu0 %v572
        %v687 = vpop.f32.mrf.mxu0
        %v688 = vadd.f32 %v476, %v687
        %689 = vmatmul.f32.gmra.mxu0 %v575
        %v690 = vpop.f32.mrf.mxu0
        %v691 = vadd.f32 %v479, %v690
        %692 = vmatmul.f32.gmra.mxu0 %v578
        %v693 = vpop.f32.mrf.mxu0
        %v694 = vadd.f32 %v482, %v693
        %695 = vmatmul.f32.gmra.mxu0 %v581
        %v696 = vpop.f32.mrf.mxu0
        %v697 = vadd.f32 %v485, %v696
        %698 = vmatmul.f32.gmra.mxu0 %v584
        %v699 = vpop.f32.mrf.mxu0
        %v700 = vadd.f32 %v488, %v699
        %701 = vmatmul.f32.gmra.mxu0 %v587
        %v702 = vpop.f32.mrf.mxu0
        %v703 = vadd.f32 %v491, %v702
        %704 = vmatmul.f32.gmra.mxu0 %v590
        %v705 = vpop.f32.mrf.mxu0
        %v706 = vadd.f32 %v494, %v705
        %707 = vdwg.mxu0
        %v708 = vld [vmem:[%s206 + $0x2] sm:$0xff]
        %v709 = vld [vmem:[%s206 + $0xa] sm:$0xff]
        %v710 = vld [vmem:[%s206 + $0x1a] sm:$0xff]
        %v711 = vld [vmem:[%s206 + $0x22] sm:$0xff]
        %v712 = vld [vmem:[%s206 + $0x32] sm:$0xff]
        %v713 = vld [vmem:[%s206 + $0x3a] sm:$0xff]
        %v714 = vld [vmem:[%s206 + $0x4a] sm:$0xff]
        %v715 = vld [vmem:[%s206 + $0x52] sm:$0xff]
        %v716 = vld [vmem:[%s206 + $0x62] sm:$0xff]
        %v717 = vld [vmem:[%s206 + $0x6a] sm:$0xff]
        %v718 = vld [vmem:[%s206 + $0x7a] sm:$0xff]
        %v719 = vld [vmem:[%s206 + $0x82] sm:$0xff]
        %v720 = vld [vmem:[%s206 + $0x92] sm:$0xff]
        %v721 = vld [vmem:[%s206 + $0x9a] sm:$0xff]
        %v722 = vld [vmem:[%s206 + $0xaa] sm:$0xff]
        %v723 = vld [vmem:[%s206 + $0xb2] sm:$0xff]
        %v724 = vld [vmem:[%s206 + $0xc2] sm:$0xff]
        %v725 = vld [vmem:[%s206 + $0xca] sm:$0xff]
        %v726 = vld [vmem:[%s206 + $0xda] sm:$0xff]
        %v727 = vld [vmem:[%s206 + $0xe2] sm:$0xff]
        %v728 = vld [vmem:[%s206 + $0xf2] sm:$0xff]
        %v729 = vld [vmem:[%s206 + $0xfa] sm:$0xff]
        %v730 = vld [vmem:[%s206 + $0x10a] sm:$0xff]
        %v731 = vld [vmem:[%s206 + $0x112] sm:$0xff]
        %v732 = vld [vmem:[%s206 + $0x122] sm:$0xff]
        %v733 = vld [vmem:[%s206 + $0x12a] sm:$0xff]
        %v734 = vld [vmem:[%s206 + $0x13a] sm:$0xff]
        %v735 = vld [vmem:[%s206 + $0x142] sm:$0xff]
        %v736 = vld [vmem:[%s206 + $0x152] sm:$0xff]
        %v737 = vld [vmem:[%s206 + $0x15a] sm:$0xff]
        %v738 = vld [vmem:[%s206 + $0x16a] sm:$0xff]
        %v739 = vld [vmem:[%s206 + $0x172] sm:$0xff]
        %s740 = scalar_lea.vmem %s210, 8
        %v741 = vld [vmem:[%s740] sm:$0xf]
        %v743 = vsel %vm282, %v708, 0
        %v746 = vsel %vm282, %v709, 0
        %v749 = vsel %vm282, %v710, 0
        %v752 = vsel %vm282, %v711, 0
        %v755 = vsel %vm282, %v712, 0
        %v758 = vsel %vm282, %v713, 0
        %v761 = vsel %vm282, %v714, 0
        %v764 = vsel %vm282, %v715, 0
        %v767 = vsel %vm282, %v716, 0
        %v770 = vsel %vm282, %v717, 0
        %v773 = vsel %vm282, %v718, 0
        %v776 = vsel %vm282, %v719, 0
        %v779 = vsel %vm282, %v720, 0
        %v782 = vsel %vm282, %v721, 0
        %v785 = vsel %vm282, %v722, 0
        %v788 = vsel %vm282, %v723, 0
        %v791 = vsel %vm282, %v724, 0
        %v794 = vsel %vm282, %v725, 0
        %v797 = vsel %vm282, %v726, 0
        %v800 = vsel %vm282, %v727, 0
        %v803 = vsel %vm282, %v728, 0
        %v806 = vsel %vm282, %v729, 0
        %v809 = vsel %vm282, %v730, 0
        %v812 = vsel %vm282, %v731, 0
        %v815 = vsel %vm282, %v732, 0
        %v818 = vsel %vm282, %v733, 0
        %v821 = vsel %vm282, %v734, 0
        %v824 = vsel %vm282, %v735, 0
        %v827 = vsel %vm282, %v736, 0
        %v830 = vsel %vm282, %v737, 0
        %v833 = vsel %vm282, %v738, 0
        %v836 = vsel %vm282, %v739, 0
        %v839 = vsel %vm379, %v741, 0
        %841 = vmatpush.msra.mxu0 0.0
        %842 = vmatpush.msra.mxu0 0.0
        %843 = vmatpush.msra.mxu0 0.0
        %844 = vmatpush.msra.mxu0 0.0
        %845 = vmatpush.msra.mxu0 0.0
        %846 = vmatpush.msra.mxu0 0.0
        %847 = vmatpush.msra.mxu0 0.0
        %848 = vmatpush.msra.mxu0 0.0
        %849 = vmatpush.msra.mxu0 0.0
        %850 = vmatpush.msra.mxu0 0.0
        %851 = vmatpush.msra.mxu0 0.0
        %852 = vmatpush.msra.mxu0 0.0
        %853 = vmatpush.msra.mxu0 0.0
        %854 = vmatpush.msra.mxu0 0.0
        %855 = vmatpush.msra.mxu0 0.0
        %856 = vmatpush.msra.mxu0 %v839
        %857 = vmatmul.f32.gmra.mxu0 %v743
        %v858 = vpop.f32.mrf.mxu0
        %v859 = vadd.f32 0.0, %v858
        %860 = vmatmul.f32.gmra.mxu0 %v746
        %v861 = vpop.f32.mrf.mxu0
        %v862 = vadd.f32 0.0, %v861
        %863 = vmatmul.f32.gmra.mxu0 %v749
        %v864 = vpop.f32.mrf.mxu0
        %v865 = vadd.f32 0.0, %v864
        %866 = vmatmul.f32.gmra.mxu0 %v752
        %v867 = vpop.f32.mrf.mxu0
        %v868 = vadd.f32 0.0, %v867
        %869 = vmatmul.f32.gmra.mxu0 %v755
        %v870 = vpop.f32.mrf.mxu0
        %v871 = vadd.f32 0.0, %v870
        %872 = vmatmul.f32.gmra.mxu0 %v758
        %v873 = vpop.f32.mrf.mxu0
        %v874 = vadd.f32 0.0, %v873
        %875 = vmatmul.f32.gmra.mxu0 %v761
        %v876 = vpop.f32.mrf.mxu0
        %v877 = vadd.f32 0.0, %v876
        %878 = vmatmul.f32.gmra.mxu0 %v764
        %v879 = vpop.f32.mrf.mxu0
        %v880 = vadd.f32 0.0, %v879
        %881 = vmatmul.f32.gmra.mxu0 %v767
        %v882 = vpop.f32.mrf.mxu0
        %v883 = vadd.f32 0.0, %v882
        %884 = vmatmul.f32.gmra.mxu0 %v770
        %v885 = vpop.f32.mrf.mxu0
        %v886 = vadd.f32 0.0, %v885
        %887 = vmatmul.f32.gmra.mxu0 %v773
        %v888 = vpop.f32.mrf.mxu0
        %v889 = vadd.f32 0.0, %v888
        %890 = vmatmul.f32.gmra.mxu0 %v776
        %v891 = vpop.f32.mrf.mxu0
        %v892 = vadd.f32 0.0, %v891
        %893 = vmatmul.f32.gmra.mxu0 %v779
        %v894 = vpop.f32.mrf.mxu0
        %v895 = vadd.f32 0.0, %v894
        %896 = vmatmul.f32.gmra.mxu0 %v782
        %v897 = vpop.f32.mrf.mxu0
        %v898 = vadd.f32 0.0, %v897
        %899 = vmatmul.f32.gmra.mxu0 %v785
        %v900 = vpop.f32.mrf.mxu0
        %v901 = vadd.f32 0.0, %v900
        %902 = vmatmul.f32.gmra.mxu0 %v788
        %v903 = vpop.f32.mrf.mxu0
        %v904 = vadd.f32 0.0, %v903
        %905 = vmatmul.f32.gmra.mxu0 %v791
        %v906 = vpop.f32.mrf.mxu0
        %v907 = vadd.f32 0.0, %v906
        %908 = vmatmul.f32.gmra.mxu0 %v794
        %v909 = vpop.f32.mrf.mxu0
        %v910 = vadd.f32 0.0, %v909
        %911 = vmatmul.f32.gmra.mxu0 %v797
        %v912 = vpop.f32.mrf.mxu0
        %v913 = vadd.f32 0.0, %v912
        %914 = vmatmul.f32.gmra.mxu0 %v800
        %v915 = vpop.f32.mrf.mxu0
        %v916 = vadd.f32 0.0, %v915
        %917 = vmatmul.f32.gmra.mxu0 %v803
        %v918 = vpop.f32.mrf.mxu0
        %v919 = vadd.f32 0.0, %v918
        %920 = vmatmul.f32.gmra.mxu0 %v806
        %v921 = vpop.f32.mrf.mxu0
        %v922 = vadd.f32 0.0, %v921
        %923 = vmatmul.f32.gmra.mxu0 %v809
        %v924 = vpop.f32.mrf.mxu0
        %v925 = vadd.f32 0.0, %v924
        %926 = vmatmul.f32.gmra.mxu0 %v812
        %v927 = vpop.f32.mrf.mxu0
        %v928 = vadd.f32 0.0, %v927
        %929 = vmatmul.f32.gmra.mxu0 %v815
        %v930 = vpop.f32.mrf.mxu0
        %v931 = vadd.f32 0.0, %v930
        %932 = vmatmul.f32.gmra.mxu0 %v818
        %v933 = vpop.f32.mrf.mxu0
        %v934 = vadd.f32 0.0, %v933
        %935 = vmatmul.f32.gmra.mxu0 %v821
        %v936 = vpop.f32.mrf.mxu0
        %v937 = vadd.f32 0.0, %v936
        %938 = vmatmul.f32.gmra.mxu0 %v824
        %v939 = vpop.f32.mrf.mxu0
        %v940 = vadd.f32 0.0, %v939
        %941 = vmatmul.f32.gmra.mxu0 %v827
        %v942 = vpop.f32.mrf.mxu0
        %v943 = vadd.f32 0.0, %v942
        %944 = vmatmul.f32.gmra.mxu0 %v830
        %v945 = vpop.f32.mrf.mxu0
        %v946 = vadd.f32 0.0, %v945
        %947 = vmatmul.f32.gmra.mxu0 %v833
        %v948 = vpop.f32.mrf.mxu0
        %v949 = vadd.f32 0.0, %v948
        %950 = vmatmul.f32.gmra.mxu0 %v836
        %v951 = vpop.f32.mrf.mxu0
        %v952 = vadd.f32 0.0, %v951
        %953 = vdwg.mxu0
        %v954 = vadd.f32 %v613, %v859
        %v955 = vadd.f32 %v616, %v862
        %v956 = vadd.f32 %v619, %v865
        %v957 = vadd.f32 %v622, %v868
        %v958 = vadd.f32 %v625, %v871
        %v959 = vadd.f32 %v628, %v874
        %v960 = vadd.f32 %v631, %v877
        %v961 = vadd.f32 %v634, %v880
        %v962 = vadd.f32 %v637, %v883
        %v963 = vadd.f32 %v640, %v886
        %v964 = vadd.f32 %v643, %v889
        %v965 = vadd.f32 %v646, %v892
        %v966 = vadd.f32 %v649, %v895
        %v967 = vadd.f32 %v652, %v898
        %v968 = vadd.f32 %v655, %v901
        %v969 = vadd.f32 %v658, %v904
        %v970 = vadd.f32 %v661, %v907
        %v971 = vadd.f32 %v664, %v910
        %v972 = vadd.f32 %v667, %v913
        %v973 = vadd.f32 %v670, %v916
        %v974 = vadd.f32 %v673, %v919
        %v975 = vadd.f32 %v676, %v922
        %v976 = vadd.f32 %v679, %v925
        %v977 = vadd.f32 %v682, %v928
        %v978 = vadd.f32 %v685, %v931
        %v979 = vadd.f32 %v688, %v934
        %v980 = vadd.f32 %v691, %v937
        %v981 = vadd.f32 %v694, %v940
        %v982 = vadd.f32 %v697, %v943
        %v983 = vadd.f32 %v700, %v946
        %v984 = vadd.f32 %v703, %v949
        %v985 = vadd.f32 %v706, %v952
        %s986 = scalar_lea.vmem %s206, 24
        %v987 = vld [vmem:[%s986] sm:$0xff]
        %v988 = vld [vmem:[%s986 + $0x8] sm:$0xff]
        %v989 = vld [vmem:[%s986 + $0x18] sm:$0xff]
        %v990 = vld [vmem:[%s986 + $0x20] sm:$0xff]
        %v991 = vld [vmem:[%s986 + $0x30] sm:$0xff]
        %v992 = vld [vmem:[%s986 + $0x38] sm:$0xff]
        %v993 = vld [vmem:[%s986 + $0x48] sm:$0xff]
        %v994 = vld [vmem:[%s986 + $0x50] sm:$0xff]
        %v995 = vld [vmem:[%s986 + $0x60] sm:$0xff]
        %v996 = vld [vmem:[%s986 + $0x68] sm:$0xff]
        %v997 = vld [vmem:[%s986 + $0x78] sm:$0xff]
        %v998 = vld [vmem:[%s986 + $0x80] sm:$0xff]
        %v999 = vld [vmem:[%s986 + $0x90] sm:$0xff]
        %v1000 = vld [vmem:[%s986 + $0x98] sm:$0xff]
        %v1001 = vld [vmem:[%s986 + $0xa8] sm:$0xff]
        %v1002 = vld [vmem:[%s986 + $0xb0] sm:$0xff]
        %v1003 = vld [vmem:[%s986 + $0xc0] sm:$0xff]
        %v1004 = vld [vmem:[%s986 + $0xc8] sm:$0xff]
        %v1005 = vld [vmem:[%s986 + $0xd8] sm:$0xff]
        %v1006 = vld [vmem:[%s986 + $0xe0] sm:$0xff]
        %v1007 = vld [vmem:[%s986 + $0xf0] sm:$0xff]
        %v1008 = vld [vmem:[%s986 + $0xf8] sm:$0xff]
        %v1009 = vld [vmem:[%s986 + $0x108] sm:$0xff]
        %v1010 = vld [vmem:[%s986 + $0x110] sm:$0xff]
        %v1011 = vld [vmem:[%s986 + $0x120] sm:$0xff]
        %v1012 = vld [vmem:[%s986 + $0x128] sm:$0xff]
        %v1013 = vld [vmem:[%s986 + $0x138] sm:$0xff]
        %v1014 = vld [vmem:[%s986 + $0x140] sm:$0xff]
        %v1015 = vld [vmem:[%s986 + $0x150] sm:$0xff]
        %v1016 = vld [vmem:[%s986 + $0x158] sm:$0xff]
        %v1017 = vld [vmem:[%s986 + $0x168] sm:$0xff]
        %v1018 = vld [vmem:[%s986 + $0x170] sm:$0xff]
        %s1019 = scalar_lea.vmem %s210, 12
        %v1020 = vld [vmem:[%s1019] sm:$0xf]
        %v1022 = vsel %vm282, %v987, 0
        %v1025 = vsel %vm282, %v988, 0
        %v1028 = vsel %vm282, %v989, 0
        %v1031 = vsel %vm282, %v990, 0
        %v1034 = vsel %vm282, %v991, 0
        %v1037 = vsel %vm282, %v992, 0
        %v1040 = vsel %vm282, %v993, 0
        %v1043 = vsel %vm282, %v994, 0
        %v1046 = vsel %vm282, %v995, 0
        %v1049 = vsel %vm282, %v996, 0
        %v1052 = vsel %vm282, %v997, 0
        %v1055 = vsel %vm282, %v998, 0
        %v1058 = vsel %vm282, %v999, 0
        %v1061 = vsel %vm282, %v1000, 0
        %v1064 = vsel %vm282, %v1001, 0
        %v1067 = vsel %vm282, %v1002, 0
        %v1070 = vsel %vm282, %v1003, 0
        %v1073 = vsel %vm282, %v1004, 0
        %v1076 = vsel %vm282, %v1005, 0
        %v1079 = vsel %vm282, %v1006, 0
        %v1082 = vsel %vm282, %v1007, 0
        %v1085 = vsel %vm282, %v1008, 0
        %v1088 = vsel %vm282, %v1009, 0
        %v1091 = vsel %vm282, %v1010, 0
        %v1094 = vsel %vm282, %v1011, 0
        %v1097 = vsel %vm282, %v1012, 0
        %v1100 = vsel %vm282, %v1013, 0
        %v1103 = vsel %vm282, %v1014, 0
        %v1106 = vsel %vm282, %v1015, 0
        %v1109 = vsel %vm282, %v1016, 0
        %v1112 = vsel %vm282, %v1017, 0
        %v1115 = vsel %vm282, %v1018, 0
        %v1118 = vsel %vm379, %v1020, 0
        %1120 = vmatpush.msra.mxu0 0.0
        %1121 = vmatpush.msra.mxu0 0.0
        %1122 = vmatpush.msra.mxu0 0.0
        %1123 = vmatpush.msra.mxu0 0.0
        %1124 = vmatpush.msra.mxu0 0.0
        %1125 = vmatpush.msra.mxu0 0.0
        %1126 = vmatpush.msra.mxu0 0.0
        %1127 = vmatpush.msra.mxu0 0.0
        %1128 = vmatpush.msra.mxu0 0.0
        %1129 = vmatpush.msra.mxu0 0.0
        %1130 = vmatpush.msra.mxu0 0.0
        %1131 = vmatpush.msra.mxu0 0.0
        %1132 = vmatpush.msra.mxu0 0.0
        %1133 = vmatpush.msra.mxu0 0.0
        %1134 = vmatpush.msra.mxu0 0.0
        %1135 = vmatpush.msra.mxu0 %v1118
        %1136 = vmatmul.f32.gmra.mxu0 %v1022
        %v1137 = vpop.f32.mrf.mxu0
        %v1138 = vadd.f32 0.0, %v1137
        %1139 = vmatmul.f32.gmra.mxu0 %v1025
        %v1140 = vpop.f32.mrf.mxu0
        %v1141 = vadd.f32 0.0, %v1140
        %1142 = vmatmul.f32.gmra.mxu0 %v1028
        %v1143 = vpop.f32.mrf.mxu0
        %v1144 = vadd.f32 0.0, %v1143
        %1145 = vmatmul.f32.gmra.mxu0 %v1031
        %v1146 = vpop.f32.mrf.mxu0
        %v1147 = vadd.f32 0.0, %v1146
        %1148 = vmatmul.f32.gmra.mxu0 %v1034
        %v1149 = vpop.f32.mrf.mxu0
        %v1150 = vadd.f32 0.0, %v1149
        %1151 = vmatmul.f32.gmra.mxu0 %v1037
        %v1152 = vpop.f32.mrf.mxu0
        %v1153 = vadd.f32 0.0, %v1152
        %1154 = vmatmul.f32.gmra.mxu0 %v1040
        %v1155 = vpop.f32.mrf.mxu0
        %v1156 = vadd.f32 0.0, %v1155
        %1157 = vmatmul.f32.gmra.mxu0 %v1043
        %v1158 = vpop.f32.mrf.mxu0
        %v1159 = vadd.f32 0.0, %v1158
        %1160 = vmatmul.f32.gmra.mxu0 %v1046
        %v1161 = vpop.f32.mrf.mxu0
        %v1162 = vadd.f32 0.0, %v1161
        %1163 = vmatmul.f32.gmra.mxu0 %v1049
        %v1164 = vpop.f32.mrf.mxu0
        %v1165 = vadd.f32 0.0, %v1164
        %1166 = vmatmul.f32.gmra.mxu0 %v1052
        %v1167 = vpop.f32.mrf.mxu0
        %v1168 = vadd.f32 0.0, %v1167
        %1169 = vmatmul.f32.gmra.mxu0 %v1055
        %v1170 = vpop.f32.mrf.mxu0
        %v1171 = vadd.f32 0.0, %v1170
        %1172 = vmatmul.f32.gmra.mxu0 %v1058
        %v1173 = vpop.f32.mrf.mxu0
        %v1174 = vadd.f32 0.0, %v1173
        %1175 = vmatmul.f32.gmra.mxu0 %v1061
        %v1176 = vpop.f32.mrf.mxu0
        %v1177 = vadd.f32 0.0, %v1176
        %1178 = vmatmul.f32.gmra.mxu0 %v1064
        %v1179 = vpop.f32.mrf.mxu0
        %v1180 = vadd.f32 0.0, %v1179
        %1181 = vmatmul.f32.gmra.mxu0 %v1067
        %v1182 = vpop.f32.mrf.mxu0
        %v1183 = vadd.f32 0.0, %v1182
        %1184 = vmatmul.f32.gmra.mxu0 %v1070
        %v1185 = vpop.f32.mrf.mxu0
        %v1186 = vadd.f32 0.0, %v1185
        %1187 = vmatmul.f32.gmra.mxu0 %v1073
        %v1188 = vpop.f32.mrf.mxu0
        %v1189 = vadd.f32 0.0, %v1188
        %1190 = vmatmul.f32.gmra.mxu0 %v1076
        %v1191 = vpop.f32.mrf.mxu0
        %v1192 = vadd.f32 0.0, %v1191
        %1193 = vmatmul.f32.gmra.mxu0 %v1079
        %v1194 = vpop.f32.mrf.mxu0
        %v1195 = vadd.f32 0.0, %v1194
        %1196 = vmatmul.f32.gmra.mxu0 %v1082
        %v1197 = vpop.f32.mrf.mxu0
        %v1198 = vadd.f32 0.0, %v1197
        %1199 = vmatmul.f32.gmra.mxu0 %v1085
        %v1200 = vpop.f32.mrf.mxu0
        %v1201 = vadd.f32 0.0, %v1200
        %1202 = vmatmul.f32.gmra.mxu0 %v1088
        %v1203 = vpop.f32.mrf.mxu0
        %v1204 = vadd.f32 0.0, %v1203
        %1205 = vmatmul.f32.gmra.mxu0 %v1091
        %v1206 = vpop.f32.mrf.mxu0
        %v1207 = vadd.f32 0.0, %v1206
        %1208 = vmatmul.f32.gmra.mxu0 %v1094
        %v1209 = vpop.f32.mrf.mxu0
        %v1210 = vadd.f32 0.0, %v1209
        %1211 = vmatmul.f32.gmra.mxu0 %v1097
        %v1212 = vpop.f32.mrf.mxu0
        %v1213 = vadd.f32 0.0, %v1212
        %1214 = vmatmul.f32.gmra.mxu0 %v1100
        %v1215 = vpop.f32.mrf.mxu0
        %v1216 = vadd.f32 0.0, %v1215
        %1217 = vmatmul.f32.gmra.mxu0 %v1103
        %v1218 = vpop.f32.mrf.mxu0
        %v1219 = vadd.f32 0.0, %v1218
        %1220 = vmatmul.f32.gmra.mxu0 %v1106
        %v1221 = vpop.f32.mrf.mxu0
        %v1222 = vadd.f32 0.0, %v1221
        %1223 = vmatmul.f32.gmra.mxu0 %v1109
        %v1224 = vpop.f32.mrf.mxu0
        %v1225 = vadd.f32 0.0, %v1224
        %1226 = vmatmul.f32.gmra.mxu0 %v1112
        %v1227 = vpop.f32.mrf.mxu0
        %v1228 = vadd.f32 0.0, %v1227
        %1229 = vmatmul.f32.gmra.mxu0 %v1115
        %v1230 = vpop.f32.mrf.mxu0
        %v1231 = vadd.f32 0.0, %v1230
        %1232 = vdwg.mxu0
        %v1233 = vadd.f32 %v954, %v1138
        %v1234 = vadd.f32 %v955, %v1141
        %v1235 = vadd.f32 %v956, %v1144
        %v1236 = vadd.f32 %v957, %v1147
        %v1237 = vadd.f32 %v958, %v1150
        %v1238 = vadd.f32 %v959, %v1153
        %v1239 = vadd.f32 %v960, %v1156
        %v1240 = vadd.f32 %v961, %v1159
        %v1241 = vadd.f32 %v962, %v1162
        %v1242 = vadd.f32 %v963, %v1165
        %v1243 = vadd.f32 %v964, %v1168
        %v1244 = vadd.f32 %v965, %v1171
        %v1245 = vadd.f32 %v966, %v1174
        %v1246 = vadd.f32 %v967, %v1177
        %v1247 = vadd.f32 %v968, %v1180
        %v1248 = vadd.f32 %v969, %v1183
        %v1249 = vadd.f32 %v970, %v1186
        %v1250 = vadd.f32 %v971, %v1189
        %v1251 = vadd.f32 %v972, %v1192
        %v1252 = vadd.f32 %v973, %v1195
        %v1253 = vadd.f32 %v974, %v1198
        %v1254 = vadd.f32 %v975, %v1201
        %v1255 = vadd.f32 %v976, %v1204
        %v1256 = vadd.f32 %v977, %v1207
        %v1257 = vadd.f32 %v978, %v1210
        %v1258 = vadd.f32 %v979, %v1213
        %v1259 = vadd.f32 %v980, %v1216
        %v1260 = vadd.f32 %v981, %v1219
        %v1261 = vadd.f32 %v982, %v1222
        %v1262 = vadd.f32 %v983, %v1225
        %v1263 = vadd.f32 %v984, %v1228
        %v1264 = vadd.f32 %v985, %v1231
        %v1265 = vld [vmem:[%s986 + $0x1] sm:$0xff]
        %v1266 = vld [vmem:[%s986 + $0x9] sm:$0xff]
        %v1267 = vld [vmem:[%s986 + $0x19] sm:$0xff]
        %v1268 = vld [vmem:[%s986 + $0x21] sm:$0xff]
        %v1269 = vld [vmem:[%s986 + $0x31] sm:$0xff]
        %v1270 = vld [vmem:[%s986 + $0x39] sm:$0xff]
        %v1271 = vld [vmem:[%s986 + $0x49] sm:$0xff]
        %v1272 = vld [vmem:[%s986 + $0x51] sm:$0xff]
        %v1273 = vld [vmem:[%s986 + $0x61] sm:$0xff]
        %v1274 = vld [vmem:[%s986 + $0x69] sm:$0xff]
        %v1275 = vld [vmem:[%s986 + $0x79] sm:$0xff]
        %v1276 = vld [vmem:[%s986 + $0x81] sm:$0xff]
        %v1277 = vld [vmem:[%s986 + $0x91] sm:$0xff]
        %v1278 = vld [vmem:[%s986 + $0x99] sm:$0xff]
        %v1279 = vld [vmem:[%s986 + $0xa9] sm:$0xff]
        %v1280 = vld [vmem:[%s986 + $0xb1] sm:$0xff]
        %v1281 = vld [vmem:[%s986 + $0xc1] sm:$0xff]
        %v1282 = vld [vmem:[%s986 + $0xc9] sm:$0xff]
        %v1283 = vld [vmem:[%s986 + $0xd9] sm:$0xff]
        %v1284 = vld [vmem:[%s986 + $0xe1] sm:$0xff]
        %v1285 = vld [vmem:[%s986 + $0xf1] sm:$0xff]
        %v1286 = vld [vmem:[%s986 + $0xf9] sm:$0xff]
        %v1287 = vld [vmem:[%s986 + $0x109] sm:$0xff]
        %v1288 = vld [vmem:[%s986 + $0x111] sm:$0xff]
        %v1289 = vld [vmem:[%s986 + $0x121] sm:$0xff]
        %v1290 = vld [vmem:[%s986 + $0x129] sm:$0xff]
        %v1291 = vld [vmem:[%s986 + $0x139] sm:$0xff]
        %v1292 = vld [vmem:[%s986 + $0x141] sm:$0xff]
        %v1293 = vld [vmem:[%s986 + $0x151] sm:$0xff]
        %v1294 = vld [vmem:[%s986 + $0x159] sm:$0xff]
        %v1295 = vld [vmem:[%s986 + $0x169] sm:$0xff]
        %v1296 = vld [vmem:[%s986 + $0x171] sm:$0xff]
        %s1297 = scalar_lea.vmem %s210, 16
        %v1298 = vld [vmem:[%s1297] sm:$0xf]
        %v1300 = vsel %vm282, %v1265, 0
        %v1303 = vsel %vm282, %v1266, 0
        %v1306 = vsel %vm282, %v1267, 0
        %v1309 = vsel %vm282, %v1268, 0
        %v1312 = vsel %vm282, %v1269, 0
        %v1315 = vsel %vm282, %v1270, 0
        %v1318 = vsel %vm282, %v1271, 0
        %v1321 = vsel %vm282, %v1272, 0
        %v1324 = vsel %vm282, %v1273, 0
        %v1327 = vsel %vm282, %v1274, 0
        %v1330 = vsel %vm282, %v1275, 0
        %v1333 = vsel %vm282, %v1276, 0
        %v1336 = vsel %vm282, %v1277, 0
        %v1339 = vsel %vm282, %v1278, 0
        %v1342 = vsel %vm282, %v1279, 0
        %v1345 = vsel %vm282, %v1280, 0
        %v1348 = vsel %vm282, %v1281, 0
        %v1351 = vsel %vm282, %v1282, 0
        %v1354 = vsel %vm282, %v1283, 0
        %v1357 = vsel %vm282, %v1284, 0
        %v1360 = vsel %vm282, %v1285, 0
        %v1363 = vsel %vm282, %v1286, 0
        %v1366 = vsel %vm282, %v1287, 0
        %v1369 = vsel %vm282, %v1288, 0
        %v1372 = vsel %vm282, %v1289, 0
        %v1375 = vsel %vm282, %v1290, 0
        %v1378 = vsel %vm282, %v1291, 0
        %v1381 = vsel %vm282, %v1292, 0
        %v1384 = vsel %vm282, %v1293, 0
        %v1387 = vsel %vm282, %v1294, 0
        %v1390 = vsel %vm282, %v1295, 0
        %v1393 = vsel %vm282, %v1296, 0
        %v1396 = vsel %vm379, %v1298, 0
        %1398 = vmatpush.msra.mxu0 0.0
        %1399 = vmatpush.msra.mxu0 0.0
        %1400 = vmatpush.msra.mxu0 0.0
        %1401 = vmatpush.msra.mxu0 0.0
        %1402 = vmatpush.msra.mxu0 0.0
        %1403 = vmatpush.msra.mxu0 0.0
        %1404 = vmatpush.msra.mxu0 0.0
        %1405 = vmatpush.msra.mxu0 0.0
        %1406 = vmatpush.msra.mxu0 0.0
        %1407 = vmatpush.msra.mxu0 0.0
        %1408 = vmatpush.msra.mxu0 0.0
        %1409 = vmatpush.msra.mxu0 0.0
        %1410 = vmatpush.msra.mxu0 0.0
        %1411 = vmatpush.msra.mxu0 0.0
        %1412 = vmatpush.msra.mxu0 0.0
        %1413 = vmatpush.msra.mxu0 %v1396
        %1414 = vmatmul.f32.gmra.mxu0 %v1300
        %v1415 = vpop.f32.mrf.mxu0
        %v1416 = vadd.f32 0.0, %v1415
        %1417 = vmatmul.f32.gmra.mxu0 %v1303
        %v1418 = vpop.f32.mrf.mxu0
        %v1419 = vadd.f32 0.0, %v1418
        %1420 = vmatmul.f32.gmra.mxu0 %v1306
        %v1421 = vpop.f32.mrf.mxu0
        %v1422 = vadd.f32 0.0, %v1421
        %1423 = vmatmul.f32.gmra.mxu0 %v1309
        %v1424 = vpop.f32.mrf.mxu0
        %v1425 = vadd.f32 0.0, %v1424
        %1426 = vmatmul.f32.gmra.mxu0 %v1312
        %v1427 = vpop.f32.mrf.mxu0
        %v1428 = vadd.f32 0.0, %v1427
        %1429 = vmatmul.f32.gmra.mxu0 %v1315
        %v1430 = vpop.f32.mrf.mxu0
        %v1431 = vadd.f32 0.0, %v1430
        %1432 = vmatmul.f32.gmra.mxu0 %v1318
        %v1433 = vpop.f32.mrf.mxu0
        %v1434 = vadd.f32 0.0, %v1433
        %1435 = vmatmul.f32.gmra.mxu0 %v1321
        %v1436 = vpop.f32.mrf.mxu0
        %v1437 = vadd.f32 0.0, %v1436
        %1438 = vmatmul.f32.gmra.mxu0 %v1324
        %v1439 = vpop.f32.mrf.mxu0
        %v1440 = vadd.f32 0.0, %v1439
        %1441 = vmatmul.f32.gmra.mxu0 %v1327
        %v1442 = vpop.f32.mrf.mxu0
        %v1443 = vadd.f32 0.0, %v1442
        %1444 = vmatmul.f32.gmra.mxu0 %v1330
        %v1445 = vpop.f32.mrf.mxu0
        %v1446 = vadd.f32 0.0, %v1445
        %1447 = vmatmul.f32.gmra.mxu0 %v1333
        %v1448 = vpop.f32.mrf.mxu0
        %v1449 = vadd.f32 0.0, %v1448
        %1450 = vmatmul.f32.gmra.mxu0 %v1336
        %v1451 = vpop.f32.mrf.mxu0
        %v1452 = vadd.f32 0.0, %v1451
        %1453 = vmatmul.f32.gmra.mxu0 %v1339
        %v1454 = vpop.f32.mrf.mxu0
        %v1455 = vadd.f32 0.0, %v1454
        %1456 = vmatmul.f32.gmra.mxu0 %v1342
        %v1457 = vpop.f32.mrf.mxu0
        %v1458 = vadd.f32 0.0, %v1457
        %1459 = vmatmul.f32.gmra.mxu0 %v1345
        %v1460 = vpop.f32.mrf.mxu0
        %v1461 = vadd.f32 0.0, %v1460
        %1462 = vmatmul.f32.gmra.mxu0 %v1348
        %v1463 = vpop.f32.mrf.mxu0
        %v1464 = vadd.f32 0.0, %v1463
        %1465 = vmatmul.f32.gmra.mxu0 %v1351
        %v1466 = vpop.f32.mrf.mxu0
        %v1467 = vadd.f32 0.0, %v1466
        %1468 = vmatmul.f32.gmra.mxu0 %v1354
        %v1469 = vpop.f32.mrf.mxu0
        %v1470 = vadd.f32 0.0, %v1469
        %1471 = vmatmul.f32.gmra.mxu0 %v1357
        %v1472 = vpop.f32.mrf.mxu0
        %v1473 = vadd.f32 0.0, %v1472
        %1474 = vmatmul.f32.gmra.mxu0 %v1360
        %v1475 = vpop.f32.mrf.mxu0
        %v1476 = vadd.f32 0.0, %v1475
        %1477 = vmatmul.f32.gmra.mxu0 %v1363
        %v1478 = vpop.f32.mrf.mxu0
        %v1479 = vadd.f32 0.0, %v1478
        %1480 = vmatmul.f32.gmra.mxu0 %v1366
        %v1481 = vpop.f32.mrf.mxu0
        %v1482 = vadd.f32 0.0, %v1481
        %1483 = vmatmul.f32.gmra.mxu0 %v1369
        %v1484 = vpop.f32.mrf.mxu0
        %v1485 = vadd.f32 0.0, %v1484
        %1486 = vmatmul.f32.gmra.mxu0 %v1372
        %v1487 = vpop.f32.mrf.mxu0
        %v1488 = vadd.f32 0.0, %v1487
        %1489 = vmatmul.f32.gmra.mxu0 %v1375
        %v1490 = vpop.f32.mrf.mxu0
        %v1491 = vadd.f32 0.0, %v1490
        %1492 = vmatmul.f32.gmra.mxu0 %v1378
        %v1493 = vpop.f32.mrf.mxu0
        %v1494 = vadd.f32 0.0, %v1493
        %1495 = vmatmul.f32.gmra.mxu0 %v1381
        %v1496 = vpop.f32.mrf.mxu0
        %v1497 = vadd.f32 0.0, %v1496
        %1498 = vmatmul.f32.gmra.mxu0 %v1384
        %v1499 = vpop.f32.mrf.mxu0
        %v1500 = vadd.f32 0.0, %v1499
        %1501 = vmatmul.f32.gmra.mxu0 %v1387
        %v1502 = vpop.f32.mrf.mxu0
        %v1503 = vadd.f32 0.0, %v1502
        %1504 = vmatmul.f32.gmra.mxu0 %v1390
        %v1505 = vpop.f32.mrf.mxu0
        %v1506 = vadd.f32 0.0, %v1505
        %1507 = vmatmul.f32.gmra.mxu0 %v1393
        %v1508 = vpop.f32.mrf.mxu0
        %v1509 = vadd.f32 0.0, %v1508
        %1510 = vdwg.mxu0
        %v1511 = vadd.f32 %v1233, %v1416
        %v1512 = vadd.f32 %v1234, %v1419
        %v1513 = vadd.f32 %v1235, %v1422
        %v1514 = vadd.f32 %v1236, %v1425
        %v1515 = vadd.f32 %v1237, %v1428
        %v1516 = vadd.f32 %v1238, %v1431
        %v1517 = vadd.f32 %v1239, %v1434
        %v1518 = vadd.f32 %v1240, %v1437
        %v1519 = vadd.f32 %v1241, %v1440
        %v1520 = vadd.f32 %v1242, %v1443
        %v1521 = vadd.f32 %v1243, %v1446
        %v1522 = vadd.f32 %v1244, %v1449
        %v1523 = vadd.f32 %v1245, %v1452
        %v1524 = vadd.f32 %v1246, %v1455
        %v1525 = vadd.f32 %v1247, %v1458
        %v1526 = vadd.f32 %v1248, %v1461
        %v1527 = vadd.f32 %v1249, %v1464
        %v1528 = vadd.f32 %v1250, %v1467
        %v1529 = vadd.f32 %v1251, %v1470
        %v1530 = vadd.f32 %v1252, %v1473
        %v1531 = vadd.f32 %v1253, %v1476
        %v1532 = vadd.f32 %v1254, %v1479
        %v1533 = vadd.f32 %v1255, %v1482
        %v1534 = vadd.f32 %v1256, %v1485
        %v1535 = vadd.f32 %v1257, %v1488
        %v1536 = vadd.f32 %v1258, %v1491
        %v1537 = vadd.f32 %v1259, %v1494
        %v1538 = vadd.f32 %v1260, %v1497
        %v1539 = vadd.f32 %v1261, %v1500
        %v1540 = vadd.f32 %v1262, %v1503
        %v1541 = vadd.f32 %v1263, %v1506
        %v1542 = vadd.f32 %v1264, %v1509
        %v1543 = vld [vmem:[%s986 + $0x2] sm:$0xff]
        %v1544 = vld [vmem:[%s986 + $0xa] sm:$0xff]
        %v1545 = vld [vmem:[%s986 + $0x1a] sm:$0xff]
        %v1546 = vld [vmem:[%s986 + $0x22] sm:$0xff]
        %v1547 = vld [vmem:[%s986 + $0x32] sm:$0xff]
        %v1548 = vld [vmem:[%s986 + $0x3a] sm:$0xff]
        %v1549 = vld [vmem:[%s986 + $0x4a] sm:$0xff]
        %v1550 = vld [vmem:[%s986 + $0x52] sm:$0xff]
        %v1551 = vld [vmem:[%s986 + $0x62] sm:$0xff]
        %v1552 = vld [vmem:[%s986 + $0x6a] sm:$0xff]
        %v1553 = vld [vmem:[%s986 + $0x7a] sm:$0xff]
        %v1554 = vld [vmem:[%s986 + $0x82] sm:$0xff]
        %v1555 = vld [vmem:[%s986 + $0x92] sm:$0xff]
        %v1556 = vld [vmem:[%s986 + $0x9a] sm:$0xff]
        %v1557 = vld [vmem:[%s986 + $0xaa] sm:$0xff]
        %v1558 = vld [vmem:[%s986 + $0xb2] sm:$0xff]
        %v1559 = vld [vmem:[%s986 + $0xc2] sm:$0xff]
        %v1560 = vld [vmem:[%s986 + $0xca] sm:$0xff]
        %v1561 = vld [vmem:[%s986 + $0xda] sm:$0xff]
        %v1562 = vld [vmem:[%s986 + $0xe2] sm:$0xff]
        %v1563 = vld [vmem:[%s986 + $0xf2] sm:$0xff]
        %v1564 = vld [vmem:[%s986 + $0xfa] sm:$0xff]
        %v1565 = vld [vmem:[%s986 + $0x10a] sm:$0xff]
        %v1566 = vld [vmem:[%s986 + $0x112] sm:$0xff]
        %v1567 = vld [vmem:[%s986 + $0x122] sm:$0xff]
        %v1568 = vld [vmem:[%s986 + $0x12a] sm:$0xff]
        %v1569 = vld [vmem:[%s986 + $0x13a] sm:$0xff]
        %v1570 = vld [vmem:[%s986 + $0x142] sm:$0xff]
        %v1571 = vld [vmem:[%s986 + $0x152] sm:$0xff]
        %v1572 = vld [vmem:[%s986 + $0x15a] sm:$0xff]
        %v1573 = vld [vmem:[%s986 + $0x16a] sm:$0xff]
        %v1574 = vld [vmem:[%s986 + $0x172] sm:$0xff]
        %s1575 = scalar_lea.vmem %s210, 20
        %v1576 = vld [vmem:[%s1575] sm:$0xf]
        %v1578 = vsel %vm282, %v1543, 0
        %v1581 = vsel %vm282, %v1544, 0
        %v1584 = vsel %vm282, %v1545, 0
        %v1587 = vsel %vm282, %v1546, 0
        %v1590 = vsel %vm282, %v1547, 0
        %v1593 = vsel %vm282, %v1548, 0
        %v1596 = vsel %vm282, %v1549, 0
        %v1599 = vsel %vm282, %v1550, 0
        %v1602 = vsel %vm282, %v1551, 0
        %v1605 = vsel %vm282, %v1552, 0
        %v1608 = vsel %vm282, %v1553, 0
        %v1611 = vsel %vm282, %v1554, 0
        %v1614 = vsel %vm282, %v1555, 0
        %v1617 = vsel %vm282, %v1556, 0
        %v1620 = vsel %vm282, %v1557, 0
        %v1623 = vsel %vm282, %v1558, 0
        %v1626 = vsel %vm282, %v1559, 0
        %v1629 = vsel %vm282, %v1560, 0
        %v1632 = vsel %vm282, %v1561, 0
        %v1635 = vsel %vm282, %v1562, 0
        %v1638 = vsel %vm282, %v1563, 0
        %v1641 = vsel %vm282, %v1564, 0
        %v1644 = vsel %vm282, %v1565, 0
        %v1647 = vsel %vm282, %v1566, 0
        %v1650 = vsel %vm282, %v1567, 0
        %v1653 = vsel %vm282, %v1568, 0
        %v1656 = vsel %vm282, %v1569, 0
        %v1659 = vsel %vm282, %v1570, 0
        %v1662 = vsel %vm282, %v1571, 0
        %v1665 = vsel %vm282, %v1572, 0
        %v1668 = vsel %vm282, %v1573, 0
        %v1671 = vsel %vm282, %v1574, 0
        %v1674 = vsel %vm379, %v1576, 0
        %1676 = vmatpush.msra.mxu0 0.0
        %1677 = vmatpush.msra.mxu0 0.0
        %1678 = vmatpush.msra.mxu0 0.0
        %1679 = vmatpush.msra.mxu0 0.0
        %1680 = vmatpush.msra.mxu0 0.0
        %1681 = vmatpush.msra.mxu0 0.0
        %1682 = vmatpush.msra.mxu0 0.0
        %1683 = vmatpush.msra.mxu0 0.0
        %1684 = vmatpush.msra.mxu0 0.0
        %1685 = vmatpush.msra.mxu0 0.0
        %1686 = vmatpush.msra.mxu0 0.0
        %1687 = vmatpush.msra.mxu0 0.0
        %1688 = vmatpush.msra.mxu0 0.0
        %1689 = vmatpush.msra.mxu0 0.0
        %1690 = vmatpush.msra.mxu0 0.0
        %1691 = vmatpush.msra.mxu0 %v1674
        %1692 = vmatmul.f32.gmra.mxu0 %v1578
        %v1693 = vpop.f32.mrf.mxu0
        %v1694 = vadd.f32 0.0, %v1693
        %1695 = vmatmul.f32.gmra.mxu0 %v1581
        %v1696 = vpop.f32.mrf.mxu0
        %v1697 = vadd.f32 0.0, %v1696
        %1698 = vmatmul.f32.gmra.mxu0 %v1584
        %v1699 = vpop.f32.mrf.mxu0
        %v1700 = vadd.f32 0.0, %v1699
        %1701 = vmatmul.f32.gmra.mxu0 %v1587
        %v1702 = vpop.f32.mrf.mxu0
        %v1703 = vadd.f32 0.0, %v1702
        %1704 = vmatmul.f32.gmra.mxu0 %v1590
        %v1705 = vpop.f32.mrf.mxu0
        %v1706 = vadd.f32 0.0, %v1705
        %1707 = vmatmul.f32.gmra.mxu0 %v1593
        %v1708 = vpop.f32.mrf.mxu0
        %v1709 = vadd.f32 0.0, %v1708
        %1710 = vmatmul.f32.gmra.mxu0 %v1596
        %v1711 = vpop.f32.mrf.mxu0
        %v1712 = vadd.f32 0.0, %v1711
        %1713 = vmatmul.f32.gmra.mxu0 %v1599
        %v1714 = vpop.f32.mrf.mxu0
        %v1715 = vadd.f32 0.0, %v1714
        %1716 = vmatmul.f32.gmra.mxu0 %v1602
        %v1717 = vpop.f32.mrf.mxu0
        %v1718 = vadd.f32 0.0, %v1717
        %1719 = vmatmul.f32.gmra.mxu0 %v1605
        %v1720 = vpop.f32.mrf.mxu0
        %v1721 = vadd.f32 0.0, %v1720
        %1722 = vmatmul.f32.gmra.mxu0 %v1608
        %v1723 = vpop.f32.mrf.mxu0
        %v1724 = vadd.f32 0.0, %v1723
        %1725 = vmatmul.f32.gmra.mxu0 %v1611
        %v1726 = vpop.f32.mrf.mxu0
        %v1727 = vadd.f32 0.0, %v1726
        %1728 = vmatmul.f32.gmra.mxu0 %v1614
        %v1729 = vpop.f32.mrf.mxu0
        %v1730 = vadd.f32 0.0, %v1729
        %1731 = vmatmul.f32.gmra.mxu0 %v1617
        %v1732 = vpop.f32.mrf.mxu0
        %v1733 = vadd.f32 0.0, %v1732
        %1734 = vmatmul.f32.gmra.mxu0 %v1620
        %v1735 = vpop.f32.mrf.mxu0
        %v1736 = vadd.f32 0.0, %v1735
        %1737 = vmatmul.f32.gmra.mxu0 %v1623
        %v1738 = vpop.f32.mrf.mxu0
        %v1739 = vadd.f32 0.0, %v1738
        %1740 = vmatmul.f32.gmra.mxu0 %v1626
        %v1741 = vpop.f32.mrf.mxu0
        %v1742 = vadd.f32 0.0, %v1741
        %1743 = vmatmul.f32.gmra.mxu0 %v1629
        %v1744 = vpop.f32.mrf.mxu0
        %v1745 = vadd.f32 0.0, %v1744
        %1746 = vmatmul.f32.gmra.mxu0 %v1632
        %v1747 = vpop.f32.mrf.mxu0
        %v1748 = vadd.f32 0.0, %v1747
        %1749 = vmatmul.f32.gmra.mxu0 %v1635
        %v1750 = vpop.f32.mrf.mxu0
        %v1751 = vadd.f32 0.0, %v1750
        %1752 = vmatmul.f32.gmra.mxu0 %v1638
        %v1753 = vpop.f32.mrf.mxu0
        %v1754 = vadd.f32 0.0, %v1753
        %1755 = vmatmul.f32.gmra.mxu0 %v1641
        %v1756 = vpop.f32.mrf.mxu0
        %v1757 = vadd.f32 0.0, %v1756
        %1758 = vmatmul.f32.gmra.mxu0 %v1644
        %v1759 = vpop.f32.mrf.mxu0
        %v1760 = vadd.f32 0.0, %v1759
        %1761 = vmatmul.f32.gmra.mxu0 %v1647
        %v1762 = vpop.f32.mrf.mxu0
        %v1763 = vadd.f32 0.0, %v1762
        %1764 = vmatmul.f32.gmra.mxu0 %v1650
        %v1765 = vpop.f32.mrf.mxu0
        %v1766 = vadd.f32 0.0, %v1765
        %1767 = vmatmul.f32.gmra.mxu0 %v1653
        %v1768 = vpop.f32.mrf.mxu0
        %v1769 = vadd.f32 0.0, %v1768
        %1770 = vmatmul.f32.gmra.mxu0 %v1656
        %v1771 = vpop.f32.mrf.mxu0
        %v1772 = vadd.f32 0.0, %v1771
        %1773 = vmatmul.f32.gmra.mxu0 %v1659
        %v1774 = vpop.f32.mrf.mxu0
        %v1775 = vadd.f32 0.0, %v1774
        %1776 = vmatmul.f32.gmra.mxu0 %v1662
        %v1777 = vpop.f32.mrf.mxu0
        %v1778 = vadd.f32 0.0, %v1777
        %1779 = vmatmul.f32.gmra.mxu0 %v1665
        %v1780 = vpop.f32.mrf.mxu0
        %v1781 = vadd.f32 0.0, %v1780
        %1782 = vmatmul.f32.gmra.mxu0 %v1668
        %v1783 = vpop.f32.mrf.mxu0
        %v1784 = vadd.f32 0.0, %v1783
        %1785 = vmatmul.f32.gmra.mxu0 %v1671
        %v1786 = vpop.f32.mrf.mxu0
        %v1787 = vadd.f32 0.0, %v1786
        %1788 = vdwg.mxu0
        %v1789 = vadd.f32 %v1511, %v1694
        %v1790 = vadd.f32 %v1512, %v1697
        %v1791 = vadd.f32 %v1513, %v1700
        %v1792 = vadd.f32 %v1514, %v1703
        %v1793 = vadd.f32 %v1515, %v1706
        %v1794 = vadd.f32 %v1516, %v1709
        %v1795 = vadd.f32 %v1517, %v1712
        %v1796 = vadd.f32 %v1518, %v1715
        %v1797 = vadd.f32 %v1519, %v1718
        %v1798 = vadd.f32 %v1520, %v1721
        %v1799 = vadd.f32 %v1521, %v1724
        %v1800 = vadd.f32 %v1522, %v1727
        %v1801 = vadd.f32 %v1523, %v1730
        %v1802 = vadd.f32 %v1524, %v1733
        %v1803 = vadd.f32 %v1525, %v1736
        %v1804 = vadd.f32 %v1526, %v1739
        %v1805 = vadd.f32 %v1527, %v1742
        %v1806 = vadd.f32 %v1528, %v1745
        %v1807 = vadd.f32 %v1529, %v1748
        %v1808 = vadd.f32 %v1530, %v1751
        %v1809 = vadd.f32 %v1531, %v1754
        %v1810 = vadd.f32 %v1532, %v1757
        %v1811 = vadd.f32 %v1533, %v1760
        %v1812 = vadd.f32 %v1534, %v1763
        %v1813 = vadd.f32 %v1535, %v1766
        %v1814 = vadd.f32 %v1536, %v1769
        %v1815 = vadd.f32 %v1537, %v1772
        %v1816 = vadd.f32 %v1538, %v1775
        %v1817 = vadd.f32 %v1539, %v1778
        %v1818 = vadd.f32 %v1540, %v1781
        %v1819 = vadd.f32 %v1541, %v1784
        %v1820 = vadd.f32 %v1542, %v1787
        %s1821 = scalar_lea.vmem %s206, 48
        %v1822 = vld [vmem:[%s1821] sm:$0xff]
        %v1823 = vld [vmem:[%s1821 + $0x8] sm:$0xff]
        %v1824 = vld [vmem:[%s1821 + $0x18] sm:$0xff]
        %v1825 = vld [vmem:[%s1821 + $0x20] sm:$0xff]
        %v1826 = vld [vmem:[%s1821 + $0x30] sm:$0xff]
        %v1827 = vld [vmem:[%s1821 + $0x38] sm:$0xff]
        %v1828 = vld [vmem:[%s1821 + $0x48] sm:$0xff]
        %v1829 = vld [vmem:[%s1821 + $0x50] sm:$0xff]
        %v1830 = vld [vmem:[%s1821 + $0x60] sm:$0xff]
        %v1831 = vld [vmem:[%s1821 + $0x68] sm:$0xff]
        %v1832 = vld [vmem:[%s1821 + $0x78] sm:$0xff]
        %v1833 = vld [vmem:[%s1821 + $0x80] sm:$0xff]
        %v1834 = vld [vmem:[%s1821 + $0x90] sm:$0xff]
        %v1835 = vld [vmem:[%s1821 + $0x98] sm:$0xff]
        %v1836 = vld [vmem:[%s1821 + $0xa8] sm:$0xff]
        %v1837 = vld [vmem:[%s1821 + $0xb0] sm:$0xff]
        %v1838 = vld [vmem:[%s1821 + $0xc0] sm:$0xff]
        %v1839 = vld [vmem:[%s1821 + $0xc8] sm:$0xff]
        %v1840 = vld [vmem:[%s1821 + $0xd8] sm:$0xff]
        %v1841 = vld [vmem:[%s1821 + $0xe0] sm:$0xff]
        %v1842 = vld [vmem:[%s1821 + $0xf0] sm:$0xff]
        %v1843 = vld [vmem:[%s1821 + $0xf8] sm:$0xff]
        %v1844 = vld [vmem:[%s1821 + $0x108] sm:$0xff]
        %v1845 = vld [vmem:[%s1821 + $0x110] sm:$0xff]
        %v1846 = vld [vmem:[%s1821 + $0x120] sm:$0xff]
        %v1847 = vld [vmem:[%s1821 + $0x128] sm:$0xff]
        %v1848 = vld [vmem:[%s1821 + $0x138] sm:$0xff]
        %v1849 = vld [vmem:[%s1821 + $0x140] sm:$0xff]
        %v1850 = vld [vmem:[%s1821 + $0x150] sm:$0xff]
        %v1851 = vld [vmem:[%s1821 + $0x158] sm:$0xff]
        %v1852 = vld [vmem:[%s1821 + $0x168] sm:$0xff]
        %v1853 = vld [vmem:[%s1821 + $0x170] sm:$0xff]
        %s1854 = scalar_lea.vmem %s210, 24
        %v1855 = vld [vmem:[%s1854] sm:$0xf]
        %v1857 = vsel %vm282, %v1822, 0
        %v1860 = vsel %vm282, %v1823, 0
        %v1863 = vsel %vm282, %v1824, 0
        %v1866 = vsel %vm282, %v1825, 0
        %v1869 = vsel %vm282, %v1826, 0
        %v1872 = vsel %vm282, %v1827, 0
        %v1875 = vsel %vm282, %v1828, 0
        %v1878 = vsel %vm282, %v1829, 0
        %v1881 = vsel %vm282, %v1830, 0
        %v1884 = vsel %vm282, %v1831, 0
        %v1887 = vsel %vm282, %v1832, 0
        %v1890 = vsel %vm282, %v1833, 0
        %v1893 = vsel %vm282, %v1834, 0
        %v1896 = vsel %vm282, %v1835, 0
        %v1899 = vsel %vm282, %v1836, 0
        %v1902 = vsel %vm282, %v1837, 0
        %v1905 = vsel %vm282, %v1838, 0
        %v1908 = vsel %vm282, %v1839, 0
        %v1911 = vsel %vm282, %v1840, 0
        %v1914 = vsel %vm282, %v1841, 0
        %v1917 = vsel %vm282, %v1842, 0
        %v1920 = vsel %vm282, %v1843, 0
        %v1923 = vsel %vm282, %v1844, 0
        %v1926 = vsel %vm282, %v1845, 0
        %v1929 = vsel %vm282, %v1846, 0
        %v1932 = vsel %vm282, %v1847, 0
        %v1935 = vsel %vm282, %v1848, 0
        %v1938 = vsel %vm282, %v1849, 0
        %v1941 = vsel %vm282, %v1850, 0
        %v1944 = vsel %vm282, %v1851, 0
        %v1947 = vsel %vm282, %v1852, 0
        %v1950 = vsel %vm282, %v1853, 0
        %v1953 = vsel %vm379, %v1855, 0
        %1955 = vmatpush.msra.mxu0 0.0
        %1956 = vmatpush.msra.mxu0 0.0
        %1957 = vmatpush.msra.mxu0 0.0
        %1958 = vmatpush.msra.mxu0 0.0
        %1959 = vmatpush.msra.mxu0 0.0
        %1960 = vmatpush.msra.mxu0 0.0
        %1961 = vmatpush.msra.mxu0 0.0
        %1962 = vmatpush.msra.mxu0 0.0
        %1963 = vmatpush.msra.mxu0 0.0
        %1964 = vmatpush.msra.mxu0 0.0
        %1965 = vmatpush.msra.mxu0 0.0
        %1966 = vmatpush.msra.mxu0 0.0
        %1967 = vmatpush.msra.mxu0 0.0
        %1968 = vmatpush.msra.mxu0 0.0
        %1969 = vmatpush.msra.mxu0 0.0
        %1970 = vmatpush.msra.mxu0 %v1953
        %1971 = vmatmul.f32.gmra.mxu0 %v1857
        %v1972 = vpop.f32.mrf.mxu0
        %v1973 = vadd.f32 0.0, %v1972
        %1974 = vmatmul.f32.gmra.mxu0 %v1860
        %v1975 = vpop.f32.mrf.mxu0
        %v1976 = vadd.f32 0.0, %v1975
        %1977 = vmatmul.f32.gmra.mxu0 %v1863
        %v1978 = vpop.f32.mrf.mxu0
        %v1979 = vadd.f32 0.0, %v1978
        %1980 = vmatmul.f32.gmra.mxu0 %v1866
        %v1981 = vpop.f32.mrf.mxu0
        %v1982 = vadd.f32 0.0, %v1981
        %1983 = vmatmul.f32.gmra.mxu0 %v1869
        %v1984 = vpop.f32.mrf.mxu0
        %v1985 = vadd.f32 0.0, %v1984
        %1986 = vmatmul.f32.gmra.mxu0 %v1872
        %v1987 = vpop.f32.mrf.mxu0
        %v1988 = vadd.f32 0.0, %v1987
        %1989 = vmatmul.f32.gmra.mxu0 %v1875
        %v1990 = vpop.f32.mrf.mxu0
        %v1991 = vadd.f32 0.0, %v1990
        %1992 = vmatmul.f32.gmra.mxu0 %v1878
        %v1993 = vpop.f32.mrf.mxu0
        %v1994 = vadd.f32 0.0, %v1993
        %1995 = vmatmul.f32.gmra.mxu0 %v1881
        %v1996 = vpop.f32.mrf.mxu0
        %v1997 = vadd.f32 0.0, %v1996
        %1998 = vmatmul.f32.gmra.mxu0 %v1884
        %v1999 = vpop.f32.mrf.mxu0
        %v2000 = vadd.f32 0.0, %v1999
        %2001 = vmatmul.f32.gmra.mxu0 %v1887
        %v2002 = vpop.f32.mrf.mxu0
        %v2003 = vadd.f32 0.0, %v2002
        %2004 = vmatmul.f32.gmra.mxu0 %v1890
        %v2005 = vpop.f32.mrf.mxu0
        %v2006 = vadd.f32 0.0, %v2005
        %2007 = vmatmul.f32.gmra.mxu0 %v1893
        %v2008 = vpop.f32.mrf.mxu0
        %v2009 = vadd.f32 0.0, %v2008
        %2010 = vmatmul.f32.gmra.mxu0 %v1896
        %v2011 = vpop.f32.mrf.mxu0
        %v2012 = vadd.f32 0.0, %v2011
        %2013 = vmatmul.f32.gmra.mxu0 %v1899
        %v2014 = vpop.f32.mrf.mxu0
        %v2015 = vadd.f32 0.0, %v2014
        %2016 = vmatmul.f32.gmra.mxu0 %v1902
        %v2017 = vpop.f32.mrf.mxu0
        %v2018 = vadd.f32 0.0, %v2017
        %2019 = vmatmul.f32.gmra.mxu0 %v1905
        %v2020 = vpop.f32.mrf.mxu0
        %v2021 = vadd.f32 0.0, %v2020
        %2022 = vmatmul.f32.gmra.mxu0 %v1908
        %v2023 = vpop.f32.mrf.mxu0
        %v2024 = vadd.f32 0.0, %v2023
        %2025 = vmatmul.f32.gmra.mxu0 %v1911
        %v2026 = vpop.f32.mrf.mxu0
        %v2027 = vadd.f32 0.0, %v2026
        %2028 = vmatmul.f32.gmra.mxu0 %v1914
        %v2029 = vpop.f32.mrf.mxu0
        %v2030 = vadd.f32 0.0, %v2029
        %2031 = vmatmul.f32.gmra.mxu0 %v1917
        %v2032 = vpop.f32.mrf.mxu0
        %v2033 = vadd.f32 0.0, %v2032
        %2034 = vmatmul.f32.gmra.mxu0 %v1920
        %v2035 = vpop.f32.mrf.mxu0
        %v2036 = vadd.f32 0.0, %v2035
        %2037 = vmatmul.f32.gmra.mxu0 %v1923
        %v2038 = vpop.f32.mrf.mxu0
        %v2039 = vadd.f32 0.0, %v2038
        %2040 = vmatmul.f32.gmra.mxu0 %v1926
        %v2041 = vpop.f32.mrf.mxu0
        %v2042 = vadd.f32 0.0, %v2041
        %2043 = vmatmul.f32.gmra.mxu0 %v1929
        %v2044 = vpop.f32.mrf.mxu0
        %v2045 = vadd.f32 0.0, %v2044
        %2046 = vmatmul.f32.gmra.mxu0 %v1932
        %v2047 = vpop.f32.mrf.mxu0
        %v2048 = vadd.f32 0.0, %v2047
        %2049 = vmatmul.f32.gmra.mxu0 %v1935
        %v2050 = vpop.f32.mrf.mxu0
        %v2051 = vadd.f32 0.0, %v2050
        %2052 = vmatmul.f32.gmra.mxu0 %v1938
        %v2053 = vpop.f32.mrf.mxu0
        %v2054 = vadd.f32 0.0, %v2053
        %2055 = vmatmul.f32.gmra.mxu0 %v1941
        %v2056 = vpop.f32.mrf.mxu0
        %v2057 = vadd.f32 0.0, %v2056
        %2058 = vmatmul.f32.gmra.mxu0 %v1944
        %v2059 = vpop.f32.mrf.mxu0
        %v2060 = vadd.f32 0.0, %v2059
        %2061 = vmatmul.f32.gmra.mxu0 %v1947
        %v2062 = vpop.f32.mrf.mxu0
        %v2063 = vadd.f32 0.0, %v2062
        %2064 = vmatmul.f32.gmra.mxu0 %v1950
        %v2065 = vpop.f32.mrf.mxu0
        %v2066 = vadd.f32 0.0, %v2065
        %2067 = vdwg.mxu0
        %v2068 = vadd.f32 %v1789, %v1973
        %v2069 = vadd.f32 %v1790, %v1976
        %v2070 = vadd.f32 %v1791, %v1979
        %v2071 = vadd.f32 %v1792, %v1982
        %v2072 = vadd.f32 %v1793, %v1985
        %v2073 = vadd.f32 %v1794, %v1988
        %v2074 = vadd.f32 %v1795, %v1991
        %v2075 = vadd.f32 %v1796, %v1994
        %v2076 = vadd.f32 %v1797, %v1997
        %v2077 = vadd.f32 %v1798, %v2000
        %v2078 = vadd.f32 %v1799, %v2003
        %v2079 = vadd.f32 %v1800, %v2006
        %v2080 = vadd.f32 %v1801, %v2009
        %v2081 = vadd.f32 %v1802, %v2012
        %v2082 = vadd.f32 %v1803, %v2015
        %v2083 = vadd.f32 %v1804, %v2018
        %v2084 = vadd.f32 %v1805, %v2021
        %v2085 = vadd.f32 %v1806, %v2024
        %v2086 = vadd.f32 %v1807, %v2027
        %v2087 = vadd.f32 %v1808, %v2030
        %v2088 = vadd.f32 %v1809, %v2033
        %v2089 = vadd.f32 %v1810, %v2036
        %v2090 = vadd.f32 %v1811, %v2039
        %v2091 = vadd.f32 %v1812, %v2042
        %v2092 = vadd.f32 %v1813, %v2045
        %v2093 = vadd.f32 %v1814, %v2048
        %v2094 = vadd.f32 %v1815, %v2051
        %v2095 = vadd.f32 %v1816, %v2054
        %v2096 = vadd.f32 %v1817, %v2057
        %v2097 = vadd.f32 %v1818, %v2060
        %v2098 = vadd.f32 %v1819, %v2063
        %v2099 = vadd.f32 %v1820, %v2066
        %v2100 = vld [vmem:[%s1821 + $0x1] sm:$0xff]
        %v2101 = vld [vmem:[%s1821 + $0x9] sm:$0xff]
        %v2102 = vld [vmem:[%s1821 + $0x19] sm:$0xff]
        %v2103 = vld [vmem:[%s1821 + $0x21] sm:$0xff]
        %v2104 = vld [vmem:[%s1821 + $0x31] sm:$0xff]
        %v2105 = vld [vmem:[%s1821 + $0x39] sm:$0xff]
        %v2106 = vld [vmem:[%s1821 + $0x49] sm:$0xff]
        %v2107 = vld [vmem:[%s1821 + $0x51] sm:$0xff]
        %v2108 = vld [vmem:[%s1821 + $0x61] sm:$0xff]
        %v2109 = vld [vmem:[%s1821 + $0x69] sm:$0xff]
        %v2110 = vld [vmem:[%s1821 + $0x79] sm:$0xff]
        %v2111 = vld [vmem:[%s1821 + $0x81] sm:$0xff]
        %v2112 = vld [vmem:[%s1821 + $0x91] sm:$0xff]
        %v2113 = vld [vmem:[%s1821 + $0x99] sm:$0xff]
        %v2114 = vld [vmem:[%s1821 + $0xa9] sm:$0xff]
        %v2115 = vld [vmem:[%s1821 + $0xb1] sm:$0xff]
        %v2116 = vld [vmem:[%s1821 + $0xc1] sm:$0xff]
        %v2117 = vld [vmem:[%s1821 + $0xc9] sm:$0xff]
        %v2118 = vld [vmem:[%s1821 + $0xd9] sm:$0xff]
        %v2119 = vld [vmem:[%s1821 + $0xe1] sm:$0xff]
        %v2120 = vld [vmem:[%s1821 + $0xf1] sm:$0xff]
        %v2121 = vld [vmem:[%s1821 + $0xf9] sm:$0xff]
        %v2122 = vld [vmem:[%s1821 + $0x109] sm:$0xff]
        %v2123 = vld [vmem:[%s1821 + $0x111] sm:$0xff]
        %v2124 = vld [vmem:[%s1821 + $0x121] sm:$0xff]
        %v2125 = vld [vmem:[%s1821 + $0x129] sm:$0xff]
        %v2126 = vld [vmem:[%s1821 + $0x139] sm:$0xff]
        %v2127 = vld [vmem:[%s1821 + $0x141] sm:$0xff]
        %v2128 = vld [vmem:[%s1821 + $0x151] sm:$0xff]
        %v2129 = vld [vmem:[%s1821 + $0x159] sm:$0xff]
        %v2130 = vld [vmem:[%s1821 + $0x169] sm:$0xff]
        %v2131 = vld [vmem:[%s1821 + $0x171] sm:$0xff]
        %s2132 = scalar_lea.vmem %s210, 28
        %v2133 = vld [vmem:[%s2132] sm:$0xf]
        %v2135 = vsel %vm282, %v2100, 0
        %v2138 = vsel %vm282, %v2101, 0
        %v2141 = vsel %vm282, %v2102, 0
        %v2144 = vsel %vm282, %v2103, 0
        %v2147 = vsel %vm282, %v2104, 0
        %v2150 = vsel %vm282, %v2105, 0
        %v2153 = vsel %vm282, %v2106, 0
        %v2156 = vsel %vm282, %v2107, 0
        %v2159 = vsel %vm282, %v2108, 0
        %v2162 = vsel %vm282, %v2109, 0
        %v2165 = vsel %vm282, %v2110, 0
        %v2168 = vsel %vm282, %v2111, 0
        %v2171 = vsel %vm282, %v2112, 0
        %v2174 = vsel %vm282, %v2113, 0
        %v2177 = vsel %vm282, %v2114, 0
        %v2180 = vsel %vm282, %v2115, 0
        %v2183 = vsel %vm282, %v2116, 0
        %v2186 = vsel %vm282, %v2117, 0
        %v2189 = vsel %vm282, %v2118, 0
        %v2192 = vsel %vm282, %v2119, 0
        %v2195 = vsel %vm282, %v2120, 0
        %v2198 = vsel %vm282, %v2121, 0
        %v2201 = vsel %vm282, %v2122, 0
        %v2204 = vsel %vm282, %v2123, 0
        %v2207 = vsel %vm282, %v2124, 0
        %v2210 = vsel %vm282, %v2125, 0
        %v2213 = vsel %vm282, %v2126, 0
        %v2216 = vsel %vm282, %v2127, 0
        %v2219 = vsel %vm282, %v2128, 0
        %v2222 = vsel %vm282, %v2129, 0
        %v2225 = vsel %vm282, %v2130, 0
        %v2228 = vsel %vm282, %v2131, 0
        %v2231 = vsel %vm379, %v2133, 0
        %2233 = vmatpush.msra.mxu0 0.0
        %2234 = vmatpush.msra.mxu0 0.0
        %2235 = vmatpush.msra.mxu0 0.0
        %2236 = vmatpush.msra.mxu0 0.0
        %2237 = vmatpush.msra.mxu0 0.0
        %2238 = vmatpush.msra.mxu0 0.0
        %2239 = vmatpush.msra.mxu0 0.0
        %2240 = vmatpush.msra.mxu0 0.0
        %2241 = vmatpush.msra.mxu0 0.0
        %2242 = vmatpush.msra.mxu0 0.0
        %2243 = vmatpush.msra.mxu0 0.0
        %2244 = vmatpush.msra.mxu0 0.0
        %2245 = vmatpush.msra.mxu0 0.0
        %2246 = vmatpush.msra.mxu0 0.0
        %2247 = vmatpush.msra.mxu0 0.0
        %2248 = vmatpush.msra.mxu0 %v2231
        %2249 = vmatmul.f32.gmra.mxu0 %v2135
        %v2250 = vpop.f32.mrf.mxu0
        %v2251 = vadd.f32 0.0, %v2250
        %2252 = vmatmul.f32.gmra.mxu0 %v2138
        %v2253 = vpop.f32.mrf.mxu0
        %v2254 = vadd.f32 0.0, %v2253
        %2255 = vmatmul.f32.gmra.mxu0 %v2141
        %v2256 = vpop.f32.mrf.mxu0
        %v2257 = vadd.f32 0.0, %v2256
        %2258 = vmatmul.f32.gmra.mxu0 %v2144
        %v2259 = vpop.f32.mrf.mxu0
        %v2260 = vadd.f32 0.0, %v2259
        %2261 = vmatmul.f32.gmra.mxu0 %v2147
        %v2262 = vpop.f32.mrf.mxu0
        %v2263 = vadd.f32 0.0, %v2262
        %2264 = vmatmul.f32.gmra.mxu0 %v2150
        %v2265 = vpop.f32.mrf.mxu0
        %v2266 = vadd.f32 0.0, %v2265
        %2267 = vmatmul.f32.gmra.mxu0 %v2153
        %v2268 = vpop.f32.mrf.mxu0
        %v2269 = vadd.f32 0.0, %v2268
        %2270 = vmatmul.f32.gmra.mxu0 %v2156
        %v2271 = vpop.f32.mrf.mxu0
        %v2272 = vadd.f32 0.0, %v2271
        %2273 = vmatmul.f32.gmra.mxu0 %v2159
        %v2274 = vpop.f32.mrf.mxu0
        %v2275 = vadd.f32 0.0, %v2274
        %2276 = vmatmul.f32.gmra.mxu0 %v2162
        %v2277 = vpop.f32.mrf.mxu0
        %v2278 = vadd.f32 0.0, %v2277
        %2279 = vmatmul.f32.gmra.mxu0 %v2165
        %v2280 = vpop.f32.mrf.mxu0
        %v2281 = vadd.f32 0.0, %v2280
        %2282 = vmatmul.f32.gmra.mxu0 %v2168
        %v2283 = vpop.f32.mrf.mxu0
        %v2284 = vadd.f32 0.0, %v2283
        %2285 = vmatmul.f32.gmra.mxu0 %v2171
        %v2286 = vpop.f32.mrf.mxu0
        %v2287 = vadd.f32 0.0, %v2286
        %2288 = vmatmul.f32.gmra.mxu0 %v2174
        %v2289 = vpop.f32.mrf.mxu0
        %v2290 = vadd.f32 0.0, %v2289
        %2291 = vmatmul.f32.gmra.mxu0 %v2177
        %v2292 = vpop.f32.mrf.mxu0
        %v2293 = vadd.f32 0.0, %v2292
        %2294 = vmatmul.f32.gmra.mxu0 %v2180
        %v2295 = vpop.f32.mrf.mxu0
        %v2296 = vadd.f32 0.0, %v2295
        %2297 = vmatmul.f32.gmra.mxu0 %v2183
        %v2298 = vpop.f32.mrf.mxu0
        %v2299 = vadd.f32 0.0, %v2298
        %2300 = vmatmul.f32.gmra.mxu0 %v2186
        %v2301 = vpop.f32.mrf.mxu0
        %v2302 = vadd.f32 0.0, %v2301
        %2303 = vmatmul.f32.gmra.mxu0 %v2189
        %v2304 = vpop.f32.mrf.mxu0
        %v2305 = vadd.f32 0.0, %v2304
        %2306 = vmatmul.f32.gmra.mxu0 %v2192
        %v2307 = vpop.f32.mrf.mxu0
        %v2308 = vadd.f32 0.0, %v2307
        %2309 = vmatmul.f32.gmra.mxu0 %v2195
        %v2310 = vpop.f32.mrf.mxu0
        %v2311 = vadd.f32 0.0, %v2310
        %2312 = vmatmul.f32.gmra.mxu0 %v2198
        %v2313 = vpop.f32.mrf.mxu0
        %v2314 = vadd.f32 0.0, %v2313
        %2315 = vmatmul.f32.gmra.mxu0 %v2201
        %v2316 = vpop.f32.mrf.mxu0
        %v2317 = vadd.f32 0.0, %v2316
        %2318 = vmatmul.f32.gmra.mxu0 %v2204
        %v2319 = vpop.f32.mrf.mxu0
        %v2320 = vadd.f32 0.0, %v2319
        %2321 = vmatmul.f32.gmra.mxu0 %v2207
        %v2322 = vpop.f32.mrf.mxu0
        %v2323 = vadd.f32 0.0, %v2322
        %2324 = vmatmul.f32.gmra.mxu0 %v2210
        %v2325 = vpop.f32.mrf.mxu0
        %v2326 = vadd.f32 0.0, %v2325
        %2327 = vmatmul.f32.gmra.mxu0 %v2213
        %v2328 = vpop.f32.mrf.mxu0
        %v2329 = vadd.f32 0.0, %v2328
        %2330 = vmatmul.f32.gmra.mxu0 %v2216
        %v2331 = vpop.f32.mrf.mxu0
        %v2332 = vadd.f32 0.0, %v2331
        %2333 = vmatmul.f32.gmra.mxu0 %v2219
        %v2334 = vpop.f32.mrf.mxu0
        %v2335 = vadd.f32 0.0, %v2334
        %2336 = vmatmul.f32.gmra.mxu0 %v2222
        %v2337 = vpop.f32.mrf.mxu0
        %v2338 = vadd.f32 0.0, %v2337
        %2339 = vmatmul.f32.gmra.mxu0 %v2225
        %v2340 = vpop.f32.mrf.mxu0
        %v2341 = vadd.f32 0.0, %v2340
        %2342 = vmatmul.f32.gmra.mxu0 %v2228
        %v2343 = vpop.f32.mrf.mxu0
        %v2344 = vadd.f32 0.0, %v2343
        %2345 = vdwg.mxu0
        %v2346 = vadd.f32 %v2068, %v2251
        %v2347 = vadd.f32 %v2069, %v2254
        %v2348 = vadd.f32 %v2070, %v2257
        %v2349 = vadd.f32 %v2071, %v2260
        %v2350 = vadd.f32 %v2072, %v2263
        %v2351 = vadd.f32 %v2073, %v2266
        %v2352 = vadd.f32 %v2074, %v2269
        %v2353 = vadd.f32 %v2075, %v2272
        %v2354 = vadd.f32 %v2076, %v2275
        %v2355 = vadd.f32 %v2077, %v2278
        %v2356 = vadd.f32 %v2078, %v2281
        %v2357 = vadd.f32 %v2079, %v2284
        %v2358 = vadd.f32 %v2080, %v2287
        %v2359 = vadd.f32 %v2081, %v2290
        %v2360 = vadd.f32 %v2082, %v2293
        %v2361 = vadd.f32 %v2083, %v2296
        %v2362 = vadd.f32 %v2084, %v2299
        %v2363 = vadd.f32 %v2085, %v2302
        %v2364 = vadd.f32 %v2086, %v2305
        %v2365 = vadd.f32 %v2087, %v2308
        %v2366 = vadd.f32 %v2088, %v2311
        %v2367 = vadd.f32 %v2089, %v2314
        %v2368 = vadd.f32 %v2090, %v2317
        %v2369 = vadd.f32 %v2091, %v2320
        %v2370 = vadd.f32 %v2092, %v2323
        %v2371 = vadd.f32 %v2093, %v2326
        %v2372 = vadd.f32 %v2094, %v2329
        %v2373 = vadd.f32 %v2095, %v2332
        %v2374 = vadd.f32 %v2096, %v2335
        %v2375 = vadd.f32 %v2097, %v2338
        %v2376 = vadd.f32 %v2098, %v2341
        %v2377 = vadd.f32 %v2099, %v2344
        %v2378 = vld [vmem:[%s1821 + $0x2] sm:$0xff]
        %v2379 = vld [vmem:[%s1821 + $0xa] sm:$0xff]
        %v2380 = vld [vmem:[%s1821 + $0x1a] sm:$0xff]
        %v2381 = vld [vmem:[%s1821 + $0x22] sm:$0xff]
        %v2382 = vld [vmem:[%s1821 + $0x32] sm:$0xff]
        %v2383 = vld [vmem:[%s1821 + $0x3a] sm:$0xff]
        %v2384 = vld [vmem:[%s1821 + $0x4a] sm:$0xff]
        %v2385 = vld [vmem:[%s1821 + $0x52] sm:$0xff]
        %v2386 = vld [vmem:[%s1821 + $0x62] sm:$0xff]
        %v2387 = vld [vmem:[%s1821 + $0x6a] sm:$0xff]
        %v2388 = vld [vmem:[%s1821 + $0x7a] sm:$0xff]
        %v2389 = vld [vmem:[%s1821 + $0x82] sm:$0xff]
        %v2390 = vld [vmem:[%s1821 + $0x92] sm:$0xff]
        %v2391 = vld [vmem:[%s1821 + $0x9a] sm:$0xff]
        %v2392 = vld [vmem:[%s1821 + $0xaa] sm:$0xff]
        %v2393 = vld [vmem:[%s1821 + $0xb2] sm:$0xff]
        %v2394 = vld [vmem:[%s1821 + $0xc2] sm:$0xff]
        %v2395 = vld [vmem:[%s1821 + $0xca] sm:$0xff]
        %v2396 = vld [vmem:[%s1821 + $0xda] sm:$0xff]
        %v2397 = vld [vmem:[%s1821 + $0xe2] sm:$0xff]
        %v2398 = vld [vmem:[%s1821 + $0xf2] sm:$0xff]
        %v2399 = vld [vmem:[%s1821 + $0xfa] sm:$0xff]
        %v2400 = vld [vmem:[%s1821 + $0x10a] sm:$0xff]
        %v2401 = vld [vmem:[%s1821 + $0x112] sm:$0xff]
        %v2402 = vld [vmem:[%s1821 + $0x122] sm:$0xff]
        %v2403 = vld [vmem:[%s1821 + $0x12a] sm:$0xff]
        %v2404 = vld [vmem:[%s1821 + $0x13a] sm:$0xff]
        %v2405 = vld [vmem:[%s1821 + $0x142] sm:$0xff]
        %v2406 = vld [vmem:[%s1821 + $0x152] sm:$0xff]
        %v2407 = vld [vmem:[%s1821 + $0x15a] sm:$0xff]
        %v2408 = vld [vmem:[%s1821 + $0x16a] sm:$0xff]
        %v2409 = vld [vmem:[%s1821 + $0x172] sm:$0xff]
        %s2410 = scalar_lea.vmem %s210, 32
        %v2411 = vld [vmem:[%s2410] sm:$0xf]
        %v2413 = vsel %vm282, %v2378, 0
        %v2416 = vsel %vm282, %v2379, 0
        %v2419 = vsel %vm282, %v2380, 0
        %v2422 = vsel %vm282, %v2381, 0
        %v2425 = vsel %vm282, %v2382, 0
        %v2428 = vsel %vm282, %v2383, 0
        %v2431 = vsel %vm282, %v2384, 0
        %v2434 = vsel %vm282, %v2385, 0
        %v2437 = vsel %vm282, %v2386, 0
        %v2440 = vsel %vm282, %v2387, 0
        %v2443 = vsel %vm282, %v2388, 0
        %v2446 = vsel %vm282, %v2389, 0
        %v2449 = vsel %vm282, %v2390, 0
        %v2452 = vsel %vm282, %v2391, 0
        %v2455 = vsel %vm282, %v2392, 0
        %v2458 = vsel %vm282, %v2393, 0
        %v2461 = vsel %vm282, %v2394, 0
        %v2464 = vsel %vm282, %v2395, 0
        %v2467 = vsel %vm282, %v2396, 0
        %v2470 = vsel %vm282, %v2397, 0
        %v2473 = vsel %vm282, %v2398, 0
        %v2476 = vsel %vm282, %v2399, 0
        %v2479 = vsel %vm282, %v2400, 0
        %v2482 = vsel %vm282, %v2401, 0
        %v2485 = vsel %vm282, %v2402, 0
        %v2488 = vsel %vm282, %v2403, 0
        %v2491 = vsel %vm282, %v2404, 0
        %v2494 = vsel %vm282, %v2405, 0
        %v2497 = vsel %vm282, %v2406, 0
        %v2500 = vsel %vm282, %v2407, 0
        %v2503 = vsel %vm282, %v2408, 0
        %v2506 = vsel %vm282, %v2409, 0
        %v2509 = vsel %vm379, %v2411, 0
        %2511 = vmatpush.msra.mxu0 0.0
        %2512 = vmatpush.msra.mxu0 0.0
        %2513 = vmatpush.msra.mxu0 0.0
        %2514 = vmatpush.msra.mxu0 0.0
        %2515 = vmatpush.msra.mxu0 0.0
        %2516 = vmatpush.msra.mxu0 0.0
        %2517 = vmatpush.msra.mxu0 0.0
        %2518 = vmatpush.msra.mxu0 0.0
        %2519 = vmatpush.msra.mxu0 0.0
        %2520 = vmatpush.msra.mxu0 0.0
        %2521 = vmatpush.msra.mxu0 0.0
        %2522 = vmatpush.msra.mxu0 0.0
        %2523 = vmatpush.msra.mxu0 0.0
        %2524 = vmatpush.msra.mxu0 0.0
        %2525 = vmatpush.msra.mxu0 0.0
        %2526 = vmatpush.msra.mxu0 %v2509
        %2527 = vmatmul.f32.gmra.mxu0 %v2413
        %v2528 = vpop.f32.mrf.mxu0
        %v2529 = vadd.f32 0.0, %v2528
        %2530 = vmatmul.f32.gmra.mxu0 %v2416
        %v2531 = vpop.f32.mrf.mxu0
        %v2532 = vadd.f32 0.0, %v2531
        %2533 = vmatmul.f32.gmra.mxu0 %v2419
        %v2534 = vpop.f32.mrf.mxu0
        %v2535 = vadd.f32 0.0, %v2534
        %2536 = vmatmul.f32.gmra.mxu0 %v2422
        %v2537 = vpop.f32.mrf.mxu0
        %v2538 = vadd.f32 0.0, %v2537
        %2539 = vmatmul.f32.gmra.mxu0 %v2425
        %v2540 = vpop.f32.mrf.mxu0
        %v2541 = vadd.f32 0.0, %v2540
        %2542 = vmatmul.f32.gmra.mxu0 %v2428
        %v2543 = vpop.f32.mrf.mxu0
        %v2544 = vadd.f32 0.0, %v2543
        %2545 = vmatmul.f32.gmra.mxu0 %v2431
        %v2546 = vpop.f32.mrf.mxu0
        %v2547 = vadd.f32 0.0, %v2546
        %2548 = vmatmul.f32.gmra.mxu0 %v2434
        %v2549 = vpop.f32.mrf.mxu0
        %v2550 = vadd.f32 0.0, %v2549
        %2551 = vmatmul.f32.gmra.mxu0 %v2437
        %v2552 = vpop.f32.mrf.mxu0
        %v2553 = vadd.f32 0.0, %v2552
        %2554 = vmatmul.f32.gmra.mxu0 %v2440
        %v2555 = vpop.f32.mrf.mxu0
        %v2556 = vadd.f32 0.0, %v2555
        %2557 = vmatmul.f32.gmra.mxu0 %v2443
        %v2558 = vpop.f32.mrf.mxu0
        %v2559 = vadd.f32 0.0, %v2558
        %2560 = vmatmul.f32.gmra.mxu0 %v2446
        %v2561 = vpop.f32.mrf.mxu0
        %v2562 = vadd.f32 0.0, %v2561
        %2563 = vmatmul.f32.gmra.mxu0 %v2449
        %v2564 = vpop.f32.mrf.mxu0
        %v2565 = vadd.f32 0.0, %v2564
        %2566 = vmatmul.f32.gmra.mxu0 %v2452
        %v2567 = vpop.f32.mrf.mxu0
        %v2568 = vadd.f32 0.0, %v2567
        %2569 = vmatmul.f32.gmra.mxu0 %v2455
        %v2570 = vpop.f32.mrf.mxu0
        %v2571 = vadd.f32 0.0, %v2570
        %2572 = vmatmul.f32.gmra.mxu0 %v2458
        %v2573 = vpop.f32.mrf.mxu0
        %v2574 = vadd.f32 0.0, %v2573
        %2575 = vmatmul.f32.gmra.mxu0 %v2461
        %v2576 = vpop.f32.mrf.mxu0
        %v2577 = vadd.f32 0.0, %v2576
        %2578 = vmatmul.f32.gmra.mxu0 %v2464
        %v2579 = vpop.f32.mrf.mxu0
        %v2580 = vadd.f32 0.0, %v2579
        %2581 = vmatmul.f32.gmra.mxu0 %v2467
        %v2582 = vpop.f32.mrf.mxu0
        %v2583 = vadd.f32 0.0, %v2582
        %2584 = vmatmul.f32.gmra.mxu0 %v2470
        %v2585 = vpop.f32.mrf.mxu0
        %v2586 = vadd.f32 0.0, %v2585
        %2587 = vmatmul.f32.gmra.mxu0 %v2473
        %v2588 = vpop.f32.mrf.mxu0
        %v2589 = vadd.f32 0.0, %v2588
        %2590 = vmatmul.f32.gmra.mxu0 %v2476
        %v2591 = vpop.f32.mrf.mxu0
        %v2592 = vadd.f32 0.0, %v2591
        %2593 = vmatmul.f32.gmra.mxu0 %v2479
        %v2594 = vpop.f32.mrf.mxu0
        %v2595 = vadd.f32 0.0, %v2594
        %2596 = vmatmul.f32.gmra.mxu0 %v2482
        %v2597 = vpop.f32.mrf.mxu0
        %v2598 = vadd.f32 0.0, %v2597
        %2599 = vmatmul.f32.gmra.mxu0 %v2485
        %v2600 = vpop.f32.mrf.mxu0
        %v2601 = vadd.f32 0.0, %v2600
        %2602 = vmatmul.f32.gmra.mxu0 %v2488
        %v2603 = vpop.f32.mrf.mxu0
        %v2604 = vadd.f32 0.0, %v2603
        %2605 = vmatmul.f32.gmra.mxu0 %v2491
        %v2606 = vpop.f32.mrf.mxu0
        %v2607 = vadd.f32 0.0, %v2606
        %2608 = vmatmul.f32.gmra.mxu0 %v2494
        %v2609 = vpop.f32.mrf.mxu0
        %v2610 = vadd.f32 0.0, %v2609
        %2611 = vmatmul.f32.gmra.mxu0 %v2497
        %v2612 = vpop.f32.mrf.mxu0
        %v2613 = vadd.f32 0.0, %v2612
        %2614 = vmatmul.f32.gmra.mxu0 %v2500
        %v2615 = vpop.f32.mrf.mxu0
        %v2616 = vadd.f32 0.0, %v2615
        %2617 = vmatmul.f32.gmra.mxu0 %v2503
        %v2618 = vpop.f32.mrf.mxu0
        %v2619 = vadd.f32 0.0, %v2618
        %2620 = vmatmul.f32.gmra.mxu0 %v2506
        %v2621 = vpop.f32.mrf.mxu0
        %v2622 = vadd.f32 0.0, %v2621
        %2623 = vdwg.mxu0
        %v2624 = vadd.f32 %v2346, %v2529
        %v2625 = vadd.f32 %v2347, %v2532
        %v2626 = vadd.f32 %v2348, %v2535
        %v2627 = vadd.f32 %v2349, %v2538
        %v2628 = vadd.f32 %v2350, %v2541
        %v2629 = vadd.f32 %v2351, %v2544
        %v2630 = vadd.f32 %v2352, %v2547
        %v2631 = vadd.f32 %v2353, %v2550
        %v2632 = vadd.f32 %v2354, %v2553
        %v2633 = vadd.f32 %v2355, %v2556
        %v2634 = vadd.f32 %v2356, %v2559
        %v2635 = vadd.f32 %v2357, %v2562
        %v2636 = vadd.f32 %v2358, %v2565
        %v2637 = vadd.f32 %v2359, %v2568
        %v2638 = vadd.f32 %v2360, %v2571
        %v2639 = vadd.f32 %v2361, %v2574
        %v2640 = vadd.f32 %v2362, %v2577
        %v2641 = vadd.f32 %v2363, %v2580
        %v2642 = vadd.f32 %v2364, %v2583
        %v2643 = vadd.f32 %v2365, %v2586
        %v2644 = vadd.f32 %v2366, %v2589
        %v2645 = vadd.f32 %v2367, %v2592
        %v2646 = vadd.f32 %v2368, %v2595
        %v2647 = vadd.f32 %v2369, %v2598
        %v2648 = vadd.f32 %v2370, %v2601
        %v2649 = vadd.f32 %v2371, %v2604
        %v2650 = vadd.f32 %v2372, %v2607
        %v2651 = vadd.f32 %v2373, %v2610
        %v2652 = vadd.f32 %v2374, %v2613
        %v2653 = vadd.f32 %v2375, %v2616
        %v2654 = vadd.f32 %v2376, %v2619
        %v2655 = vadd.f32 %v2377, %v2622
        %v2657 = vperm.slane %v214, 0
        %v2659 = vadd.f32 %v2624, %v2657
        %v2660 = vadd.f32 %v2625, %v2657
        %v2661 = vadd.f32 %v2626, %v2657
        %v2662 = vadd.f32 %v2627, %v2657
        %v2663 = vadd.f32 %v2628, %v2657
        %v2664 = vadd.f32 %v2629, %v2657
        %v2665 = vadd.f32 %v2630, %v2657
        %v2666 = vadd.f32 %v2631, %v2657
        %v2667 = vadd.f32 %v2632, %v2657
        %v2668 = vadd.f32 %v2633, %v2657
        %v2669 = vadd.f32 %v2634, %v2657
        %v2670 = vadd.f32 %v2635, %v2657
        %v2671 = vadd.f32 %v2636, %v2657
        %v2672 = vadd.f32 %v2637, %v2657
        %v2673 = vadd.f32 %v2638, %v2657
        %v2674 = vadd.f32 %v2639, %v2657
        %v2675 = vadd.f32 %v2640, %v2657
        %v2676 = vadd.f32 %v2641, %v2657
        %v2677 = vadd.f32 %v2642, %v2657
        %v2678 = vadd.f32 %v2643, %v2657
        %v2679 = vadd.f32 %v2644, %v2657
        %v2680 = vadd.f32 %v2645, %v2657
        %v2681 = vadd.f32 %v2646, %v2657
        %v2682 = vadd.f32 %v2647, %v2657
        %v2683 = vadd.f32 %v2648, %v2657
        %v2684 = vadd.f32 %v2649, %v2657
        %v2685 = vadd.f32 %v2650, %v2657
        %v2686 = vadd.f32 %v2651, %v2657
        %v2687 = vadd.f32 %v2652, %v2657
        %v2688 = vadd.f32 %v2653, %v2657
        %v2689 = vadd.f32 %v2654, %v2657
        %v2690 = vadd.f32 %v2655, %v2657
        %2691 = vst [vmem:[%s201] sm:$0xff] %v2659
        %2692 = vst [vmem:[%s201 + $0x8] sm:$0xff] %v2660
        %2693 = vst [vmem:[%s201 + $0x10] sm:$0xff] %v2661
        %2694 = vst [vmem:[%s201 + $0x18] sm:$0xff] %v2662
        %2695 = vst [vmem:[%s201 + $0x20] sm:$0xff] %v2663
        %2696 = vst [vmem:[%s201 + $0x28] sm:$0xff] %v2664
        %2697 = vst [vmem:[%s201 + $0x30] sm:$0xff] %v2665
        %2698 = vst [vmem:[%s201 + $0x38] sm:$0xff] %v2666
        %2699 = vst [vmem:[%s201 + $0x40] sm:$0xff] %v2667
        %2700 = vst [vmem:[%s201 + $0x48] sm:$0xff] %v2668
        %2701 = vst [vmem:[%s201 + $0x50] sm:$0xff] %v2669
        %2702 = vst [vmem:[%s201 + $0x58] sm:$0xff] %v2670
        %2703 = vst [vmem:[%s201 + $0x60] sm:$0xff] %v2671
        %2704 = vst [vmem:[%s201 + $0x68] sm:$0xff] %v2672
        %2705 = vst [vmem:[%s201 + $0x70] sm:$0xff] %v2673
        %2706 = vst [vmem:[%s201 + $0x78] sm:$0xff] %v2674
        %2707 = vst [vmem:[%s201 + $0x80] sm:$0xff] %v2675
        %2708 = vst [vmem:[%s201 + $0x88] sm:$0xff] %v2676
        %2709 = vst [vmem:[%s201 + $0x90] sm:$0xff] %v2677
        %2710 = vst [vmem:[%s201 + $0x98] sm:$0xff] %v2678
        %2711 = vst [vmem:[%s201 + $0xa0] sm:$0xff] %v2679
        %2712 = vst [vmem:[%s201 + $0xa8] sm:$0xff] %v2680
        %2713 = vst [vmem:[%s201 + $0xb0] sm:$0xff] %v2681
        %2714 = vst [vmem:[%s201 + $0xb8] sm:$0xff] %v2682
        %2715 = vst [vmem:[%s201 + $0xc0] sm:$0xff] %v2683
        %2716 = vst [vmem:[%s201 + $0xc8] sm:$0xff] %v2684
        %2717 = vst [vmem:[%s201 + $0xd0] sm:$0xff] %v2685
        %2718 = vst [vmem:[%s201 + $0xd8] sm:$0xff] %v2686
        %2719 = vst [vmem:[%s201 + $0xe0] sm:$0xff] %v2687
        %2720 = vst [vmem:[%s201 + $0xe8] sm:$0xff] %v2688
        %2721 = vst [vmem:[%s201 + $0xf0] sm:$0xff] %v2689
        %2722 = vst [vmem:[%s201 + $0xf8] sm:$0xff] %v2690
        %s2723 = sand.u32 %s117, 1
        %s2724 = scalar_lea.sflag [#allocation3], %s2723
        %s2725 = sand.u32 %s117, 1
        %s2726 = smul.addr %s2725, 256
        %s2727 = scalar_lea.vmem [#allocation2], %s2726
        // Predicated region
        $region33: #{tpu_custom_call.1} parent=31 // pred_check
          %p2728 = pneg %p127
        $region34: #{tpu_custom_call.1} parent=31 // pred_check_branch
          %2730 = sbr.rel (%p2728) target = $region36
        $region35: #{tpu_custom_call.1} parent=31 // pred_region
          %2732 = vsyncadd %s2724, 0
          %s2733 = smul.addr %s21, 32
          %s2734 = sadd.s32 %s22, %s2733
          %s2735 = smul.addr %s2734, 8
          %s2736 = scalar_lea.hbm %s3, %s2735
          %s2737 = sshll.u32 %s2727, 4
          %s2738 = int_to_ptr.vmem [resolvable:$true] %s2737
          %s2739 = sshll.u32 %s2736, 4
          %s2740 = int_to_ptr.hbm [resolvable:$true] %s2739
          %2745 = dma.vmem_to_hbm [thread:$0]  %s2738, 4096, %s2740, %s2724, 128, 128, 8
        $region36: #{tpu_custom_call.1} parent=31 // pred_fallthru
          _
      $region32: #{tpu_custom_call.1} parent=5 // pred_fallthru
        _
      %p2746 = scmp.le.s32.totalorder 2, %s12
      // Predicated region
      $region37: #{tpu_custom_call.1} parent=5 // pred_check
        %p2747 = pneg %p2746
      $region38: #{tpu_custom_call.1} parent=5 // pred_check_branch
        %2749 = sbr.rel (%p2747) target = $region40
      $region39: #{tpu_custom_call.1} parent=5 // pred_region
        %s2750 = ssub.s32 %s12, 2
        // Predicated region
        $region41: #{tpu_custom_call.1} parent=39 // pred_check
          %p2751 = pneg %p133
        $region42: #{tpu_custom_call.1} parent=39 // pred_check_branch
          %2753 = sbr.rel (%p2751) target = $region44
        $region43: #{tpu_custom_call.1} parent=39 // pred_region
          %s2754 = sand.u32 %s118, 1
          %s2755 = scalar_lea.sflag [#allocation3], %s2754
          %s2756 = sand.u32 %s118, 1
          %s2757 = smul.addr %s2756, 256
          %s2758 = scalar_lea.vmem [#allocation2], %s2757
          %2760 = dma.done %s2755, 4096
        $region44: #{tpu_custom_call.1} parent=39 // pred_fallthru
          _
      $region40: #{tpu_custom_call.1} parent=5 // pred_fallthru
        _
    $region6: #{tpu_custom_call.1} parent=1 // loop_footer
      %s16 = sadd.s32 1, %s12
    $region7: #{tpu_custom_call.1} parent=1 // loop_footer_branch
      %11 = sbr.rel target = $region3
    $region8: #{tpu_custom_call.1} parent=1 // loop_exit
      _
    %2761 = vsyncpa [#allocation3], 1
    %s2762 = scalar_lea.sflag [#allocation3], 1
    %2763 = vsyncpa %s2762, 1

</llo_original>
